<compile_context>
chip_gen: v7x
topology: tpu7x:2x2x1
jax: 0.10.0
libtpu: 0.0.40
codegen_flags: <defaults>
</compile_context>

<pallas_src>
import functools

import jax
import jax.numpy as jnp
from jax.experimental import pallas as pl
from jax.experimental.pallas import tpu as pltpu


def _cheb_conv_kernel(x_ref, chebt_ref, theta_ref, o_ref, *,
                      n_vertices, tile_bt, k_order, c_out, compute_dtype):
    # x_ref:     (tile_bt * N, C_in)    rows are (bt, node), bt-major
    # chebt_ref: (N, K * N)             chebt_ref[n, k*N + m] == T_k[m, n]
    # theta_ref: (C_in, K * C_out)      theta_ref[i, k*C_out + o] == Theta_k[i, o]
    # o_ref:     (N, tile_bt * C_out)   lane-dense output slab
    n = n_vertices

    # Stage 1: single MXU matmul, all K orders folded into Theta_stack lanes.
    h = jnp.dot(x_ref[...], theta_ref[...],
                preferred_element_type=jnp.float32)          # (tile_bt*N, K*C_out)

    # Single relayout: rows (bt, m) x lanes (k, o)  ->  rows (k, m) x lanes (bt, o)
    h = h.reshape(tile_bt, n, k_order, c_out)
    h = jnp.transpose(h, (2, 1, 0, 3))                        # (K, N, tile_bt, C_out)
    h_slab = h.reshape(k_order * n, tile_bt * c_out).astype(compute_dtype)

    # Stage 2: single MXU matmul; the sum over k is done inside the MXU
    # (contracting dim K*N), so there is no loop-carried f32 accumulator.
    out = jnp.dot(chebt_ref[...], h_slab,
                  preferred_element_type=jnp.float32)         # (N, tile_bt*C_out)

    o_ref[...] = jnp.maximum(out, 0.0).astype(o_ref.dtype)    # ReLU


def _pick_tile_bt(bt_total, n, c_in, c_out, k, vmem_budget_bytes,
                  elem_bytes, out_elem_bytes):
    """Largest divisor of B*T whose resident tiles fit the VMEM budget,
    preferring a lane-dense output slab (tile_bt*C_out % 128 == 0) and at
    least 2 grid steps (so both v7x TensorCores get work)."""
    def est_bytes(d):
        x_blk = 2 * d * n * c_in * elem_bytes            # double-buffered input
        out_blk = 2 * n * d * c_out * out_elem_bytes     # double-buffered output
        interm = 2 * d * n * k * c_out * 4               # h + h_slab (f32)
        weights = (k * n * n + c_in * k * c_out) * elem_bytes  # single-buffered
        return x_blk + out_blk + interm + weights

    divisors = [d for d in range(1, bt_total + 1) if bt_total % d == 0]
    lane_dense = [d for d in divisors if (d * c_out) % 128 == 0] or [bt_total]
    fits = ([d for d in lane_dense if est_bytes(d) <= vmem_budget_bytes]
            or [min(lane_dense)])
    multi_step = [d for d in fits if bt_total // d >= 2]
    return max(multi_step) if multi_step else max(fits)


def cheb_conv(x, cheb_polynomials, theta, *, tile_bt=None,
              compute_dtype=jnp.float32, x_format="bnct",
              vmem_budget_bytes=48 * 1024 * 1024):
    """ChebConv forward.

    x_format="bnct": x is (B, N, C_in, T)  (the PyTorch module layout)
    x_format="btnc": x is (B, T, N, C_in)  (producer layout; skips the
                     wrapper-side HBM transpose round-trip)
    Returns (B, N, C_out, T) = relu(sum_k T_k^T @ x_t @ Theta_k).
    """
    if x_format == "bnct":
        B, N, C_in, T = x.shape
        # TODO(synk): ideally the producer hands x over already as (B,T,N,C_in)
        # ("btnc") so this one-off HBM transpose disappears entirely.
        x_btnc = jnp.transpose(x, (0, 3, 1, 2))
    elif x_format == "btnc":
        B, T, N, C_in = x.shape
        x_btnc = x
    else:
        raise ValueError(f"unknown x_format: {x_format}")

    K, C_in_t, C_out = theta.shape
    assert C_in_t == C_in
    bt_total = B * T

    elem = jnp.dtype(compute_dtype).itemsize
    out_elem = jnp.dtype(x.dtype).itemsize
    if tile_bt is None:
        tile_bt = _pick_tile_bt(bt_total, N, C_in, C_out, K,
                                vmem_budget_bytes, elem, out_elem)
    assert bt_total % tile_bt == 0
    grid = (bt_total // tile_bt,)

    # Wrapper-side weight prep (tiny, once per call):
    #   Theta_stack[i, k*C_out + o] = Theta_k[i, o]
    #   Chebt_wide [n, k*N    + m] = T_k[m, n]
    theta_stack = jnp.transpose(theta, (1, 0, 2)).reshape(C_in, K * C_out)
    theta_stack = theta_stack.astype(compute_dtype)
    chebt_wide = jnp.transpose(cheb_polynomials, (2, 0, 1)).reshape(N, K * N)
    chebt_wide = chebt_wide.astype(compute_dtype)
    # rows are (b*T + t) major, node minor -> contiguous per-tile row blocks.
    x2d = x_btnc.reshape(bt_total * N, C_in).astype(compute_dtype)

    kernel = functools.partial(
        _cheb_conv_kernel, n_vertices=N, tile_bt=tile_bt,
        k_order=K, c_out=C_out, compute_dtype=compute_dtype)

    out_slab = pl.pallas_call(
        kernel,
        out_shape=jax.ShapeDtypeStruct((N, bt_total * C_out), x.dtype),
        grid_spec=pltpu.PrefetchScalarGridSpec(
            num_scalar_prefetch=0,
            grid=grid,
            in_specs=[
                # one (tile_bt) slab of samples per grid step
                pl.BlockSpec((tile_bt * N, C_in), lambda j: (j, 0)),
                # grid-invariant operands: fetched once, single-buffered
                pl.BlockSpec((N, K * N), lambda j: (0, 0),
                             pipeline_mode=pl.Buffered(1)),
                pl.BlockSpec((C_in, K * C_out), lambda j: (0, 0),
                             pipeline_mode=pl.Buffered(1)),
            ],
            out_specs=pl.BlockSpec((N, tile_bt * C_out), lambda j: (0, j)),
        ),
        compiler_params=pltpu.CompilerParams(
            dimension_semantics=("parallel",),
            vmem_limit_bytes=int(vmem_budget_bytes),
        ),
    )(x2d, chebt_wide, theta_stack)

    # out_slab[n, (b*T + t)*C_out + o]  ->  (B, N, C_out, T)
    out = out_slab.reshape(N, B, T, C_out)
    return jnp.transpose(out, (1, 0, 3, 2))


def cheb_conv_reference(x, cheb_polynomials, theta):
    """Pure-JAX f32 mirror of the PyTorch forward (same loop order)."""
    B, N, C_in, T = x.shape
    K, _, C_out = theta.shape
    hp = jax.lax.Precision.HIGHEST
    outs = []
    for t in range(T):
        gs = x[:, :, :, t]                                   # (B, N, C_in)
        out = jnp.zeros((B, N, C_out), jnp.float32)
        for k in range(K):
            t_k = cheb_polynomials[k]
            rhs = jnp.einsum('bmi,mn->bni', gs, t_k, precision=hp)
            out = out + jnp.einsum('bni,io->bno', rhs, theta[k], precision=hp)
        outs.append(out[..., None])
    return jax.nn.relu(jnp.concatenate(outs, axis=-1))


def make_cheb_polynomials(key, N, K):
    """Deterministic Chebyshev polynomials of a scaled graph Laplacian."""
    a = jax.random.uniform(key, (N, N), dtype=jnp.float32)
    adj = (a + a.T) * 0.5
    adj = adj * (1.0 - jnp.eye(N, dtype=jnp.float32))
    deg = jnp.diag(jnp.sum(adj, axis=1))
    lap = deg - adj
    lam_max = jnp.max(jnp.linalg.eigvalsh(lap))
    l_tilde = (2.0 / lam_max) * lap - jnp.eye(N, dtype=jnp.float32)
    polys = [jnp.eye(N, dtype=jnp.float32), l_tilde]
    for _ in range(2, K):
        polys.append(2.0 * l_tilde @ polys[-1] - polys[-2])
    return jnp.stack(polys[:K], axis=0)                      # (K, N, N)


if __name__ == "__main__":
    # Small shapes consistent with the module: batch=2, vertices=16,
    # in_channels=4, out_channels=32, timesteps=8, K=3.
    B, N, C_in, C_out, T, K = 2, 16, 4, 32, 8, 3

    key = jax.random.PRNGKey(0)
    k_x, k_adj, k_theta = jax.random.split(key, 3)

    x = jax.random.normal(k_x, (B, N, C_in, T), dtype=jnp.float32)
    cheb_polys = make_cheb_polynomials(k_adj, N, K)           # (K, N, N)
    theta = jax.random.normal(k_theta, (K, C_in, C_out), dtype=jnp.float32) * 0.1

    ref = cheb_conv_reference(x, cheb_polys, theta)

    # Default (f32-operand) path: module layout (B, N, C_in, T).
    out = jax.block_until_ready(cheb_conv(x, cheb_polys, theta))
    assert out.shape == (B, N, C_out, T), out.shape
    max_err = float(jnp.max(jnp.abs(out - ref)))
    assert max_err < 1e-3, f"max abs error vs reference: {max_err}"

    # Producer layout (B, T, N, C_in): skips the wrapper HBM transpose,
    # must give identical results.
    x_btnc = jnp.transpose(x, (0, 3, 1, 2))
    out2 = jax.block_until_ready(
        cheb_conv(x_btnc, cheb_polys, theta, x_format="btnc"))
    max_err2 = float(jnp.max(jnp.abs(out2 - ref)))
    assert max_err2 < 1e-3, f"max abs error (btnc path): {max_err2}"

    print("KERNEL_OK")
</pallas_src>

<mosaic_0001>
module attributes {stable_mosaic.version = 11 : i64} {
  func.func @_cheb_conv_kernel(%arg0: i32, %arg1: memref<128x4xf32, #tpu.memory_space<vmem>>, %arg2: memref<16x48xf32, #tpu.memory_space<vmem>>, %arg3: memref<4x96xf32, #tpu.memory_space<vmem>>, %arg4: memref<16x256xf32, #tpu.memory_space<vmem>>) attributes {dimension_semantics = [#tpu.dimension_semantics<parallel>], iteration_bounds = array<i64: 2>, scalar_prefetch = 0 : i64, scratch_operands = 0 : i64, tpu.core_type = #tpu.core_type<tc>, window_params = [{transform_indices = @transform_0, window_bounds = array<i64: 128, 4>}, {pipeline_mode = #tpu.pipeline_mode<synchronous>, transform_indices = @transform_1, window_bounds = array<i64: 16, 48>}, {pipeline_mode = #tpu.pipeline_mode<synchronous>, transform_indices = @transform_2, window_bounds = array<i64: 4, 96>}, {transform_indices = @transform_3, window_bounds = array<i64: 16, 256>}]} {
    %c0 = arith.constant 0 : index
    %c0_0 = arith.constant 0 : index
    %0 = vector.load %arg1[%c0, %c0_0] : memref<128x4xf32, #tpu.memory_space<vmem>>, vector<128x4xf32>
    %c0_1 = arith.constant 0 : index
    %c0_2 = arith.constant 0 : index
    %1 = vector.load %arg3[%c0_1, %c0_2] : memref<4x96xf32, #tpu.memory_space<vmem>>, vector<4x96xf32>
    %cst = arith.constant dense<0.000000e+00> : vector<128x96xf32>
    %2 = tpu.matmul %0, %1, %cst {dimension_numbers = #tpu.dot_dimension_numbers<[1], [0], [0], [1], [0, 0, 1, 1], [], []>} : vector<128x4xf32>, vector<4x96xf32>, vector<128x96xf32> -> vector<128x96xf32>
    %3 = vector.shape_cast %2 : vector<128x96xf32> to vector<8x16x3x32xf32>
    %4 = tpu.transpose %3, [2, 1, 0, 3] : vector<8x16x3x32xf32> -> vector<3x16x8x32xf32>
    %5 = vector.shape_cast %4 : vector<3x16x8x32xf32> to vector<48x256xf32>
    %c0_3 = arith.constant 0 : index
    %c0_4 = arith.constant 0 : index
    %6 = vector.load %arg2[%c0_3, %c0_4] : memref<16x48xf32, #tpu.memory_space<vmem>>, vector<16x48xf32>
    %cst_5 = arith.constant dense<0.000000e+00> : vector<16x256xf32>
    %7 = tpu.matmul %6, %5, %cst_5 {dimension_numbers = #tpu.dot_dimension_numbers<[1], [0], [0], [1], [0, 0, 1, 1], [], []>} : vector<16x48xf32>, vector<48x256xf32>, vector<16x256xf32> -> vector<16x256xf32>
    %cst_6 = arith.constant 0.000000e+00 : f32
    %8 = vector.broadcast %cst_6 : f32 to vector<16x256xf32>
    %9 = arith.maximumf %7, %8 : vector<16x256xf32>
    %c0_7 = arith.constant 0 : index
    %c0_8 = arith.constant 0 : index
    %10 = vector.load %arg4[%c0_7, %c0_8] : memref<16x256xf32, #tpu.memory_space<vmem>>, vector<16x256xf32>
    tpu.vector_store %arg4[%c0_7, %c0_8], %9 {strides = array<i32>} : memref<16x256xf32, #tpu.memory_space<vmem>>, vector<16x256xf32>,
    return
  }
  func.func @transform_0(%arg0: i32) -> (i32, i32) {
    %c0_i32 = arith.constant 0 : i32
    %c0_i32_0 = arith.constant 0 : i32
    return %arg0, %c0_i32 : i32, i32
  }
  func.func @transform_1(%arg0: i32) -> (i32, i32) {
    %c0_i32 = arith.constant 0 : i32
    %c0_i32_0 = arith.constant 0 : i32
    %c0_i32_1 = arith.constant 0 : i32
    return %c0_i32, %c0_i32_0 : i32, i32
  }
  func.func @transform_2(%arg0: i32) -> (i32, i32) {
    %c0_i32 = arith.constant 0 : i32
    %c0_i32_0 = arith.constant 0 : i32
    %c0_i32_1 = arith.constant 0 : i32
    return %c0_i32, %c0_i32_0 : i32, i32
  }
  func.func @transform_3(%arg0: i32) -> (i32, i32) {
    %c0_i32 = arith.constant 0 : i32
    %c0_i32_0 = arith.constant 0 : i32
    return %c0_i32, %arg0 : i32, i32
  }
}

</mosaic_0001>

<llo_original>
// kernel: tpu_custom_call.1
$region0: #{tpu_custom_call.1}
  #allocation0 [shape = 'u32[]', space=smem, size = 0x4, offset = 0x4, fixed_abs, tag = 'smem constant byte address 0x4 - core index']
  #allocation1 [shape = 'u32[144,128]{1,0:T(1,128)}', space=vmem, size = 0x12000, scoped, tag = 'internal scratch']
  %s0 = inlined_call_operand.vmem [shape: f32[256,4], index: 0, kind: input, shape index: {}]
  %s1 = inlined_call_operand.vmem [shape: f32[16,48], index: 1, kind: input, shape index: {}]
  %s2 = inlined_call_operand.vmem [shape: f32[4,96], index: 2, kind: input, shape index: {}]
  %s3 = inlined_call_operand.hbm [shape: f32[16,512], index: 3, kind: output, shape index: {}]
  %s4 = sld [smem:[#allocation0]]
  $region45: #{tpu_custom_call.1} parent=0
    _
  %s6 = ssub.s32 1, %s4
  %s7 = scalar_select 0, %s6, %s4
  $region1: #{tpu_custom_call.1} parent=0
    #allocation2 [shape = 'u8[32768]{0}', space=vmem, size = 0x8000, scoped, tag = 'output window, operand 0']
    #allocation3 [shape = 's32[2]{0}', space=sflag, size = 0x8, scoped, tag = 'scoped memory for tpu_custom_call.1']
    %8 = vsyncpa [#allocation3], 0
    %s9 = scalar_lea.sflag [#allocation3], 1
    %10 = vsyncpa %s9, 0
    loop: start=0, step=1, limit=4
    $region2: #{tpu_custom_call.1} parent=1 // loop_pre_header
      _
    $region3: #{tpu_custom_call.1} parent=1 // loop_header
      %s12 = sphi 0, %s16
      %p13 = scmp.ge.s32.totalorder %s12, 4
      %s22 = sphi 0, %s24
      %s25 = sphi 0, %s22
      %s26 = sphi 0, %s25
      %s42 = sphi 0, %s26
      %s46 = sphi 0, %s46
      %s48 = sphi 0, %s46
      %s49 = sphi 0, %s48
      %s63 = sphi 0, %s49
      %s67 = sphi 0, %s67
      %s69 = sphi 0, %s67
      %s70 = sphi 0, %s69
      %s84 = sphi 0, %s70
      %s90 = sphi 0, %s92
      %s93 = sphi 0, %s90
      %s94 = sphi 0, %s93
      %s110 = sphi 0, %s94
    $region4: #{tpu_custom_call.1} parent=1 // loop_header_branch
      %15 = sbr.rel (%p13) target = $region8
    $region5: #{tpu_custom_call.1} parent=1 // loop_body
      %s17 = ssub.s32 %s12, 1
      %s18 = ssub.s32 %s12, 2
      %s19 = sadd.s32 %s12, 1
      %s20 = ssub.s32 %s12, %s19
      %p21 = scmp.eq.s32.totalorder %s20, 0
      %s23 = sadd.s32 %s22, 1
      %s24 = scalar_select %p21, %s22, %s23
      %p27 = pneg %p21
      %p28 = scmp.eq.s32.totalorder %s12, 1
      %p29 = por %p27, %p28
      %p30 = scmp.ne.s32.totalorder %s22, %s25
      %p31 = scmp.eq.s32.totalorder %s12, 0
      %p32 = por %p30, %p31
      %p33 = scmp.ne.s32.totalorder %s22, %s25
      %p34 = scmp.eq.s32.totalorder %s17, 1
      %p35 = por %p33, %p34
      %p36 = scmp.ne.s32.totalorder %s25, %s26
      %p37 = scmp.eq.s32.totalorder %s17, 0
      %p38 = por %p36, %p37
      %p39 = scmp.ne.s32.totalorder %s25, %s26
      %p40 = scmp.eq.s32.totalorder %s18, 1
      %p41 = por %p39, %p40
      %p43 = scmp.ne.s32.totalorder %s26, %s42
      %p44 = scmp.eq.s32.totalorder %s18, 0
      %p45 = por %p43, %p44
      %s47 = sadd.s32 %s46, 1
      %p50 = scmp.eq.s32.totalorder %s12, 1
      %p51 = scmp.ne.s32.totalorder %s46, %s48
      %p52 = scmp.eq.s32.totalorder %s12, 0
      %p53 = por %p51, %p52
      %p54 = scmp.ne.s32.totalorder %s46, %s48
      %p55 = scmp.eq.s32.totalorder %s17, 1
      %p56 = por %p54, %p55
      %p57 = scmp.ne.s32.totalorder %s48, %s49
      %p58 = scmp.eq.s32.totalorder %s17, 0
      %p59 = por %p57, %p58
      %p60 = scmp.ne.s32.totalorder %s48, %s49
      %p61 = scmp.eq.s32.totalorder %s18, 1
      %p62 = por %p60, %p61
      %p64 = scmp.ne.s32.totalorder %s49, %s63
      %p65 = scmp.eq.s32.totalorder %s18, 0
      %p66 = por %p64, %p65
      %s68 = sadd.s32 %s67, 1
      %p71 = scmp.eq.s32.totalorder %s12, 1
      %p72 = scmp.ne.s32.totalorder %s67, %s69
      %p73 = scmp.eq.s32.totalorder %s12, 0
      %p74 = por %p72, %p73
      %p75 = scmp.ne.s32.totalorder %s67, %s69
      %p76 = scmp.eq.s32.totalorder %s17, 1
      %p77 = por %p75, %p76
      %p78 = scmp.ne.s32.totalorder %s69, %s70
      %p79 = scmp.eq.s32.totalorder %s17, 0
      %p80 = por %p78, %p79
      %p81 = scmp.ne.s32.totalorder %s69, %s70
      %p82 = scmp.eq.s32.totalorder %s18, 1
      %p83 = por %p81, %p82
      %p85 = scmp.ne.s32.totalorder %s70, %s84
      %p86 = scmp.eq.s32.totalorder %s18, 0
      %p87 = por %p85, %p86
      %s88 = ssub.s32 %s12, %s19
      %p89 = scmp.eq.s32.totalorder %s88, 0
      %s91 = sadd.s32 %s90, 1
      %s92 = scalar_select %p89, %s90, %s91
      %p95 = pneg %p89
      %p96 = scmp.eq.s32.totalorder %s12, 1
      %p97 = por %p95, %p96
      %p98 = scmp.ne.s32.totalorder %s90, %s93
      %p99 = scmp.eq.s32.totalorder %s12, 0
      %p100 = por %p98, %p99
      %p101 = scmp.ne.s32.totalorder %s90, %s93
      %p102 = scmp.eq.s32.totalorder %s17, 1
      %p103 = por %p101, %p102
      %p104 = scmp.ne.s32.totalorder %s93, %s94
      %p105 = scmp.eq.s32.totalorder %s17, 0
      %p106 = por %p104, %p105
      %p107 = scmp.ne.s32.totalorder %s93, %s94
      %p108 = scmp.eq.s32.totalorder %s18, 1
      %p109 = por %p107, %p108
      %p111 = scmp.ne.s32.totalorder %s94, %s110
      %p112 = scmp.eq.s32.totalorder %s18, 0
      %p113 = por %p111, %p112
      %p114 = scmp.le.s32.totalorder 1, %s12
      %p115 = scmp.lt.s32.totalorder %s12, 3
      %p116 = pnand %p114, %p115
      %p117 = pneg %p116
      // Predicated region
      $region9: #{tpu_custom_call.1} parent=5 // pred_check
        _
      $region10: #{tpu_custom_call.1} parent=5 // pred_check_branch
        %119 = sbr.rel (%p116) target = $region12
      $region11: #{tpu_custom_call.1} parent=5 // pred_region
        %s120 = ssub.s32 %s12, 1
        // Predicated region
        $region13: #{tpu_custom_call.1} parent=11 // pred_check
          %p121 = pneg %p59
        $region14: #{tpu_custom_call.1} parent=11 // pred_check_branch
          %123 = sbr.rel (%p121) target = $region16
        $region15: #{tpu_custom_call.1} parent=11 // pred_region
          _
        $region16: #{tpu_custom_call.1} parent=11 // pred_fallthru
          _
        // Predicated region
        $region17: #{tpu_custom_call.1} parent=11 // pred_check
          %p124 = pneg %p80
        $region18: #{tpu_custom_call.1} parent=11 // pred_check_branch
          %126 = sbr.rel (%p124) target = $region20
        $region19: #{tpu_custom_call.1} parent=11 // pred_region
          _
        $region20: #{tpu_custom_call.1} parent=11 // pred_fallthru
          _
      $region12: #{tpu_custom_call.1} parent=5 // pred_fallthru
        _
      %p127 = scmp.lt.s32.totalorder %s12, 2
      // Predicated region
      $region21: #{tpu_custom_call.1} parent=5 // pred_check
        %p128 = pneg %p127
      $region22: #{tpu_custom_call.1} parent=5 // pred_check_branch
        %130 = sbr.rel (%p128) target = $region24
      $region23: #{tpu_custom_call.1} parent=5 // pred_region
        // Predicated region
        $region25: #{tpu_custom_call.1} parent=23 // pred_check
          %p131 = pneg %p32
        $region26: #{tpu_custom_call.1} parent=23 // pred_check_branch
          %133 = sbr.rel (%p131) target = $region28
        $region27: #{tpu_custom_call.1} parent=23 // pred_region
          %s134 = smul.u32 16, %s12
          %p135 = scmp.lt.s32.totalorder %s134, 31
          %s136 = scalar_select %p135, %s134, 31
          %s137 = smul.addr %s136, 8
          %s138 = scalar_lea.vmem %s0, %s137
          %s139 = smul.u32 16, %s12
        $region28: #{tpu_custom_call.1} parent=23 // pred_fallthru
          _
      $region24: #{tpu_custom_call.1} parent=5 // pred_fallthru
        _
      %p140 = scmp.le.s32.totalorder 1, %s12
      %p141 = scmp.lt.s32.totalorder %s12, 3
      %p142 = pnand %p140, %p141
      %p143 = pneg %p142
      // Predicated region
      $region29: #{tpu_custom_call.1} parent=5 // pred_check
        _
      $region30: #{tpu_custom_call.1} parent=5 // pred_check_branch
        %145 = sbr.rel (%p142) target = $region32
      $region31: #{tpu_custom_call.1} parent=5 // pred_region
        %s146 = ssub.s32 %s12, 1
        %s147 = smul.u32 16, %s17
        %p148 = scmp.lt.s32.totalorder %s147, 31
        %s149 = scalar_select %p148, %s147, 31
        %s150 = smul.addr %s149, 8
        %s151 = scalar_lea.vmem %s0, %s150
        %p152 = pneg %p38
        %p153 = pneg %p35
        %p154 = pneg %p59
        %p155 = pneg %p56
        %p156 = pneg %p80
        %p157 = pneg %p77
        %p158 = pneg %p106
        %p159 = pneg %p103
        %s160 = sand.u32 %s93, 1
        %s161 = scalar_lea.sflag [#allocation3], %s160
        %s162 = sand.u32 %s93, 1
        %s163 = smul.addr %s162, 32
        %s164 = scalar_lea.vmem [#allocation2], %s163
        %s165 = smul.u32 16, %s17
        %p166 = scmp.lt.s32.totalorder %s165, 31
        %s167 = scalar_select %p166, %s165, 31
        %s168 = smul.addr %s167, 8
        %s169 = scalar_lea.vmem %s0, %s168
        %s170 = smul.u32 16, %s17
        %s171 = smul.u32 2, %s17
        %v172 = vld [vmem:[%s169] sm:$0xff]
        %v173 = vld [vmem:[%s169 + $0x8] sm:$0xff]
        %v174 = vld [vmem:[%s169 + $0x10] sm:$0xff]
        %v175 = vld [vmem:[%s169 + $0x18] sm:$0xff]
        %v176 = vld [vmem:[%s169 + $0x20] sm:$0xff]
        %v177 = vld [vmem:[%s169 + $0x28] sm:$0xff]
        %v178 = vld [vmem:[%s169 + $0x30] sm:$0xff]
        %v179 = vld [vmem:[%s169 + $0x38] sm:$0xff]
        %v180 = vld [vmem:[%s169 + $0x40] sm:$0xff]
        %v181 = vld [vmem:[%s169 + $0x48] sm:$0xff]
        %v182 = vld [vmem:[%s169 + $0x50] sm:$0xff]
        %v183 = vld [vmem:[%s169 + $0x58] sm:$0xff]
        %v184 = vld [vmem:[%s169 + $0x60] sm:$0xff]
        %v185 = vld [vmem:[%s169 + $0x68] sm:$0xff]
        %v186 = vld [vmem:[%s169 + $0x70] sm:$0xff]
        %v187 = vld [vmem:[%s169 + $0x78] sm:$0xff]
        %v188 = vld [vmem:[%s2] sm:$0xf]
        %vm189 = vcmask 31744
        %v191 = vsel %vm189, %v172, 0
        %v194 = vsel %vm189, %v173, 0
        %v197 = vsel %vm189, %v174, 0
        %v200 = vsel %vm189, %v175, 0
        %v203 = vsel %vm189, %v176, 0
        %v206 = vsel %vm189, %v177, 0
        %v209 = vsel %vm189, %v178, 0
        %v212 = vsel %vm189, %v179, 0
        %v215 = vsel %vm189, %v180, 0
        %v218 = vsel %vm189, %v181, 0
        %v221 = vsel %vm189, %v182, 0
        %v224 = vsel %vm189, %v183, 0
        %v227 = vsel %vm189, %v184, 0
        %v230 = vsel %vm189, %v185, 0
        %v233 = vsel %vm189, %v186, 0
        %v236 = vsel %vm189, %v187, 0
        %vm238 = vcmask 1043456
        %v240 = vsel %vm238, %v188, 0
        %242 = vmatprep.subr.mxu0 0.0
        %243 = vmatpush1.msra.mxu0 %v240
        %244 = vmatprep.subr.mxu0 0.0
        %245 = vmatpush1.msra.mxu0 0.0
        %246 = vmatprep.subr.mxu0 0.0
        %247 = vmatpush1.msra.mxu0 0.0
        %248 = vmatprep.subr.mxu0 0.0
        %249 = vmatpush1.msra.mxu0 0.0
        %250 = vmatprep.subr.mxu0 0.0
        %251 = vmatpush1.msra.mxu0 0.0
        %252 = vmatprep.subr.mxu0 0.0
        %253 = vmatpush1.msra.mxu0 0.0
        %254 = vmatprep.subr.mxu0 0.0
        %255 = vmatpush1.msra.mxu0 0.0
        %256 = vmatprep.subr.mxu0 0.0
        %257 = vmatpush1.msra.mxu0 0.0
        %258 = vmatprep.subr.mxu0 0.0
        %259 = vmatpush1.msra.mxu0 0.0
        %260 = vmatprep.subr.mxu0 0.0
        %261 = vmatpush1.msra.mxu0 0.0
        %262 = vmatprep.subr.mxu0 0.0
        %263 = vmatpush1.msra.mxu0 0.0
        %264 = vmatprep.subr.mxu0 0.0
        %265 = vmatpush1.msra.mxu0 0.0
        %266 = vmatprep.subr.mxu0 0.0
        %267 = vmatpush1.msra.mxu0 0.0
        %268 = vmatprep.subr.mxu0 0.0
        %269 = vmatpush1.msra.mxu0 0.0
        %270 = vmatprep.subr.mxu0 0.0
        %271 = vmatpush1.msra.mxu0 0.0
        %272 = vmatprep.subr.mxu0 0.0
        %273 = vmatpush1.msra.mxu0 0.0
        %274 = vmatprep.subr.mxu0 0.0
        %275 = vmatpush1.msra.mxu0 0.0
        %276 = vmatprep.subr.mxu0 0.0
        %277 = vmatpush1.msra.mxu0 0.0
        %278 = vmatprep.subr.mxu0 0.0
        %279 = vmatpush1.msra.mxu0 0.0
        %280 = vmatprep.subr.mxu0 0.0
        %281 = vmatpush1.msra.mxu0 0.0
        %282 = vmatprep.subr.mxu0 0.0
        %283 = vmatpush1.msra.mxu0 0.0
        %284 = vmatprep.subr.mxu0 0.0
        %285 = vmatpush1.msra.mxu0 0.0
        %286 = vmatprep.subr.mxu0 0.0
        %287 = vmatpush1.msra.mxu0 0.0
        %288 = vmatprep.subr.mxu0 0.0
        %289 = vmatpush1.msra.mxu0 0.0
        %290 = vmatprep.subr.mxu0 0.0
        %291 = vmatpush1.msra.mxu0 0.0
        %292 = vmatprep.subr.mxu0 0.0
        %293 = vmatpush1.msra.mxu0 0.0
        %294 = vmatprep.subr.mxu0 0.0
        %295 = vmatpush1.msra.mxu0 0.0
        %296 = vmatprep.subr.mxu0 0.0
        %297 = vmatpush1.msra.mxu0 0.0
        %298 = vmatprep.subr.mxu0 0.0
        %299 = vmatpush1.msra.mxu0 0.0
        %300 = vmatprep.subr.mxu0 0.0
        %301 = vmatpush1.msra.mxu0 0.0
        %302 = vmatprep.subr.mxu0 0.0
        %303 = vmatpush1.msra.mxu0 0.0
        %304 = vmatprep.subr.mxu0 0.0
        %305 = vmatpush1.msra.mxu0 0.0
        %306 = vmatprep.mubr.f32.mxu0 0.0
        %307 = vmatmul.mubr.f32.gmra.mrb[0].mxu0 %v191
        %v308 = vpop.f32.mrb[0].mxu0
        %v309 = vadd.f32 0.0, %v308
        %v310 = vpop.f32.mrb[0].mxu0
        %311 = vmatprep.mubr.f32.mxu0 0.0
        %312 = vmatmul.mubr.f32.gmra.mrb[0].mxu0 %v194
        %v313 = vpop.f32.mrb[0].mxu0
        %v314 = vadd.f32 0.0, %v313
        %v315 = vpop.f32.mrb[0].mxu0
        %316 = vmatprep.mubr.f32.mxu0 0.0
        %317 = vmatmul.mubr.f32.gmra.mrb[0].mxu0 %v197
        %v318 = vpop.f32.mrb[0].mxu0
        %v319 = vadd.f32 0.0, %v318
        %v320 = vpop.f32.mrb[0].mxu0
        %321 = vmatprep.mubr.f32.mxu0 0.0
        %322 = vmatmul.mubr.f32.gmra.mrb[0].mxu0 %v200
        %v323 = vpop.f32.mrb[0].mxu0
        %v324 = vadd.f32 0.0, %v323
        %v325 = vpop.f32.mrb[0].mxu0
        %326 = vmatprep.mubr.f32.mxu0 0.0
        %327 = vmatmul.mubr.f32.gmra.mrb[0].mxu0 %v203
        %v328 = vpop.f32.mrb[0].mxu0
        %v329 = vadd.f32 0.0, %v328
        %v330 = vpop.f32.mrb[0].mxu0
        %331 = vmatprep.mubr.f32.mxu0 0.0
        %332 = vmatmul.mubr.f32.gmra.mrb[0].mxu0 %v206
        %v333 = vpop.f32.mrb[0].mxu0
        %v334 = vadd.f32 0.0, %v333
        %v335 = vpop.f32.mrb[0].mxu0
        %336 = vmatprep.mubr.f32.mxu0 0.0
        %337 = vmatmul.mubr.f32.gmra.mrb[0].mxu0 %v209
        %v338 = vpop.f32.mrb[0].mxu0
        %v339 = vadd.f32 0.0, %v338
        %v340 = vpop.f32.mrb[0].mxu0
        %341 = vmatprep.mubr.f32.mxu0 0.0
        %342 = vmatmul.mubr.f32.gmra.mrb[0].mxu0 %v212
        %v343 = vpop.f32.mrb[0].mxu0
        %v344 = vadd.f32 0.0, %v343
        %v345 = vpop.f32.mrb[0].mxu0
        %346 = vmatprep.mubr.f32.mxu0 0.0
        %347 = vmatmul.mubr.f32.gmra.mrb[0].mxu0 %v215
        %v348 = vpop.f32.mrb[0].mxu0
        %v349 = vadd.f32 0.0, %v348
        %v350 = vpop.f32.mrb[0].mxu0
        %351 = vmatprep.mubr.f32.mxu0 0.0
        %352 = vmatmul.mubr.f32.gmra.mrb[0].mxu0 %v218
        %v353 = vpop.f32.mrb[0].mxu0
        %v354 = vadd.f32 0.0, %v353
        %v355 = vpop.f32.mrb[0].mxu0
        %356 = vmatprep.mubr.f32.mxu0 0.0
        %357 = vmatmul.mubr.f32.gmra.mrb[0].mxu0 %v221
        %v358 = vpop.f32.mrb[0].mxu0
        %v359 = vadd.f32 0.0, %v358
        %v360 = vpop.f32.mrb[0].mxu0
        %361 = vmatprep.mubr.f32.mxu0 0.0
        %362 = vmatmul.mubr.f32.gmra.mrb[0].mxu0 %v224
        %v363 = vpop.f32.mrb[0].mxu0
        %v364 = vadd.f32 0.0, %v363
        %v365 = vpop.f32.mrb[0].mxu0
        %366 = vmatprep.mubr.f32.mxu0 0.0
        %367 = vmatmul.mubr.f32.gmra.mrb[0].mxu0 %v227
        %v368 = vpop.f32.mrb[0].mxu0
        %v369 = vadd.f32 0.0, %v368
        %v370 = vpop.f32.mrb[0].mxu0
        %371 = vmatprep.mubr.f32.mxu0 0.0
        %372 = vmatmul.mubr.f32.gmra.mrb[0].mxu0 %v230
        %v373 = vpop.f32.mrb[0].mxu0
        %v374 = vadd.f32 0.0, %v373
        %v375 = vpop.f32.mrb[0].mxu0
        %376 = vmatprep.mubr.f32.mxu0 0.0
        %377 = vmatmul.mubr.f32.gmra.mrb[0].mxu0 %v233
        %v378 = vpop.f32.mrb[0].mxu0
        %v379 = vadd.f32 0.0, %v378
        %v380 = vpop.f32.mrb[0].mxu0
        %381 = vmatprep.mubr.f32.mxu0 0.0
        %382 = vmatmul.mubr.f32.gmra.mrb[0].mxu0 %v236
        %v383 = vpop.f32.mrb[0].mxu0
        %v384 = vadd.f32 0.0, %v383
        %v385 = vpop.f32.mrb[0].mxu0
        %386 = vdwg.mxu0
        %403 = vrot.lane.b32.xlu0 %v309, 96
        %v404 = vpop.permute.xlu0 %403
        %405 = vrot.lane.b32.xlu0 %v314, 96
        %v406 = vpop.permute.xlu0 %405
        %407 = vrot.lane.b32.xlu0 %v319, 96
        %v408 = vpop.permute.xlu0 %407
        %409 = vrot.lane.b32.xlu0 %v324, 96
        %v410 = vpop.permute.xlu0 %409
        %411 = vrot.lane.b32.xlu0 %v329, 96
        %v412 = vpop.permute.xlu0 %411
        %413 = vrot.lane.b32.xlu0 %v334, 96
        %v414 = vpop.permute.xlu0 %413
        %415 = vrot.lane.b32.xlu0 %v339, 96
        %v416 = vpop.permute.xlu0 %415
        %417 = vrot.lane.b32.xlu0 %v344, 96
        %v418 = vpop.permute.xlu0 %417
        %419 = vrot.lane.b32.xlu0 %v349, 96
        %v420 = vpop.permute.xlu0 %419
        %421 = vrot.lane.b32.xlu0 %v354, 96
        %v422 = vpop.permute.xlu0 %421
        %423 = vrot.lane.b32.xlu0 %v359, 96
        %v424 = vpop.permute.xlu0 %423
        %425 = vrot.lane.b32.xlu0 %v364, 96
        %v426 = vpop.permute.xlu0 %425
        %427 = vrot.lane.b32.xlu0 %v369, 96
        %v428 = vpop.permute.xlu0 %427
        %429 = vrot.lane.b32.xlu0 %v374, 96
        %v430 = vpop.permute.xlu0 %429
        %431 = vrot.lane.b32.xlu0 %v379, 96
        %v432 = vpop.permute.xlu0 %431
        %433 = vrot.lane.b32.xlu0 %v384, 96
        %v434 = vpop.permute.xlu0 %433
        %451 = vrot.lane.b32.xlu0 %v309, 64
        %v452 = vpop.permute.xlu0 %451
        %453 = vrot.lane.b32.xlu0 %v314, 64
        %v454 = vpop.permute.xlu0 %453
        %455 = vrot.lane.b32.xlu0 %v319, 64
        %v456 = vpop.permute.xlu0 %455
        %457 = vrot.lane.b32.xlu0 %v324, 64
        %v458 = vpop.permute.xlu0 %457
        %459 = vrot.lane.b32.xlu0 %v329, 64
        %v460 = vpop.permute.xlu0 %459
        %461 = vrot.lane.b32.xlu0 %v334, 64
        %v462 = vpop.permute.xlu0 %461
        %463 = vrot.lane.b32.xlu0 %v339, 64
        %v464 = vpop.permute.xlu0 %463
        %465 = vrot.lane.b32.xlu0 %v344, 64
        %v466 = vpop.permute.xlu0 %465
        %467 = vrot.lane.b32.xlu0 %v349, 64
        %v468 = vpop.permute.xlu0 %467
        %469 = vrot.lane.b32.xlu0 %v354, 64
        %v470 = vpop.permute.xlu0 %469
        %471 = vrot.lane.b32.xlu0 %v359, 64
        %v472 = vpop.permute.xlu0 %471
        %473 = vrot.lane.b32.xlu0 %v364, 64
        %v474 = vpop.permute.xlu0 %473
        %475 = vrot.lane.b32.xlu0 %v369, 64
        %v476 = vpop.permute.xlu0 %475
        %477 = vrot.lane.b32.xlu0 %v374, 64
        %v478 = vpop.permute.xlu0 %477
        %479 = vrot.lane.b32.xlu0 %v379, 64
        %v480 = vpop.permute.xlu0 %479
        %481 = vrot.lane.b32.xlu0 %v384, 64
        %v482 = vpop.permute.xlu0 %481
        %v499 = vcombine.low %v309, %v452
        %v500 = vcombine.high %v309, %v452
        %v502 = vunpack.c.l.s4 1983009808
        %v503 = vunpack.c.0.s8 %v502
        %v504 = vlaneseq
        %v505 = vshrl.u32 %v504, 7
        %v506 = vsub.s32 %v503, %v505
        %v507 = vrot.slane %v499, %v506
        %v509 = vunpack.c.l.s4 1983009808
        %v510 = vunpack.c.0.s8 %v509
        %v511 = vlaneseq
        %v512 = vshrl.u32 %v511, 7
        %v513 = vsub.s32 %v510, %v512
        %v514 = vrot.slane %v500, %v513
        %v515 = vcombine.high %v404, 0.0
        %v517 = vunpack.c.l.s4 1983009808
        %v518 = vunpack.c.0.s8 %v517
        %v519 = vlaneseq
        %v520 = vshrl.u32 %v519, 7
        %v521 = vsub.s32 %v518, %v520
        %v522 = vrot.slane %v404, %v521
        %v524 = vunpack.c.l.s4 1983009808
        %v525 = vunpack.c.0.s8 %v524
        %v526 = vlaneseq
        %v527 = vshrl.u32 %v526, 7
        %v528 = vsub.s32 %v525, %v527
        %v529 = vrot.slane %v515, %v528
        %v530 = vcombine.low %v507, %v522
        %v531 = vcombine.high %v507, %v522
        %v533 = vunpack.c.l.s4 1934713408
        %v534 = vunpack.c.0.s8 %v533
        %v535 = vlaneseq
        %v536 = vshrl.u32 %v535, 7
        %v537 = vsub.s32 %v534, %v536
        %v538 = vrot.slane %v530, %v537
        %v540 = vunpack.c.l.s4 1934713408
        %v541 = vunpack.c.0.s8 %v540
        %v542 = vlaneseq
        %v543 = vshrl.u32 %v542, 7
        %v544 = vsub.s32 %v541, %v543
        %v545 = vrot.slane %v531, %v544
        %v546 = vcombine.low %v514, %v529
        %v547 = vcombine.high %v514, %v529
        %v549 = vunpack.c.l.s4 1934713408
        %v550 = vunpack.c.0.s8 %v549
        %v551 = vlaneseq
        %v552 = vshrl.u32 %v551, 7
        %v553 = vsub.s32 %v550, %v552
        %v554 = vrot.slane %v546, %v553
        %v556 = vunpack.c.l.s4 1934713408
        %v557 = vunpack.c.0.s8 %v556
        %v558 = vlaneseq
        %v559 = vshrl.u32 %v558, 7
        %v560 = vsub.s32 %v557, %v559
        %v561 = vrot.slane %v547, %v560
        %v562 = vcombine.high %v538, 0.0
        %v563 = vcombine.high %v545, 0.0
        %v564 = vcombine.high %v554, 0.0
        %v565 = vcombine.high %v561, 0.0
        %v566 = vcombine.low %v314, %v454
        %v567 = vcombine.high %v314, %v454
        %v569 = vunpack.c.l.s4 1983009808
        %v570 = vunpack.c.0.s8 %v569
        %v571 = vlaneseq
        %v572 = vshrl.u32 %v571, 7
        %v573 = vsub.s32 %v570, %v572
        %v574 = vrot.slane %v566, %v573
        %v576 = vunpack.c.l.s4 1983009808
        %v577 = vunpack.c.0.s8 %v576
        %v578 = vlaneseq
        %v579 = vshrl.u32 %v578, 7
        %v580 = vsub.s32 %v577, %v579
        %v581 = vrot.slane %v567, %v580
        %v582 = vcombine.high %v406, 0.0
        %v584 = vunpack.c.l.s4 1983009808
        %v585 = vunpack.c.0.s8 %v584
        %v586 = vlaneseq
        %v587 = vshrl.u32 %v586, 7
        %v588 = vsub.s32 %v585, %v587
        %v589 = vrot.slane %v406, %v588
        %v591 = vunpack.c.l.s4 1983009808
        %v592 = vunpack.c.0.s8 %v591
        %v593 = vlaneseq
        %v594 = vshrl.u32 %v593, 7
        %v595 = vsub.s32 %v592, %v594
        %v596 = vrot.slane %v582, %v595
        %v597 = vcombine.low %v574, %v589
        %v598 = vcombine.high %v574, %v589
        %v600 = vunpack.c.l.s4 1934713408
        %v601 = vunpack.c.0.s8 %v600
        %v602 = vlaneseq
        %v603 = vshrl.u32 %v602, 7
        %v604 = vsub.s32 %v601, %v603
        %v605 = vrot.slane %v597, %v604
        %v607 = vunpack.c.l.s4 1934713408
        %v608 = vunpack.c.0.s8 %v607
        %v609 = vlaneseq
        %v610 = vshrl.u32 %v609, 7
        %v611 = vsub.s32 %v608, %v610
        %v612 = vrot.slane %v598, %v611
        %v613 = vcombine.low %v581, %v596
        %v614 = vcombine.high %v581, %v596
        %v616 = vunpack.c.l.s4 1934713408
        %v617 = vunpack.c.0.s8 %v616
        %v618 = vlaneseq
        %v619 = vshrl.u32 %v618, 7
        %v620 = vsub.s32 %v617, %v619
        %v621 = vrot.slane %v613, %v620
        %v623 = vunpack.c.l.s4 1934713408
        %v624 = vunpack.c.0.s8 %v623
        %v625 = vlaneseq
        %v626 = vshrl.u32 %v625, 7
        %v627 = vsub.s32 %v624, %v626
        %v628 = vrot.slane %v614, %v627
        %v629 = vcombine.high %v605, 0.0
        %v630 = vcombine.high %v612, 0.0
        %v631 = vcombine.high %v621, 0.0
        %v632 = vcombine.high %v628, 0.0
        %v633 = vcombine.low %v319, %v456
        %v634 = vcombine.high %v319, %v456
        %v636 = vunpack.c.l.s4 1983009808
        %v637 = vunpack.c.0.s8 %v636
        %v638 = vlaneseq
        %v639 = vshrl.u32 %v638, 7
        %v640 = vsub.s32 %v637, %v639
        %v641 = vrot.slane %v633, %v640
        %v643 = vunpack.c.l.s4 1983009808
        %v644 = vunpack.c.0.s8 %v643
        %v645 = vlaneseq
        %v646 = vshrl.u32 %v645, 7
        %v647 = vsub.s32 %v644, %v646
        %v648 = vrot.slane %v634, %v647
        %v649 = vcombine.high %v408, 0.0
        %v651 = vunpack.c.l.s4 1983009808
        %v652 = vunpack.c.0.s8 %v651
        %v653 = vlaneseq
        %v654 = vshrl.u32 %v653, 7
        %v655 = vsub.s32 %v652, %v654
        %v656 = vrot.slane %v408, %v655
        %v658 = vunpack.c.l.s4 1983009808
        %v659 = vunpack.c.0.s8 %v658
        %v660 = vlaneseq
        %v661 = vshrl.u32 %v660, 7
        %v662 = vsub.s32 %v659, %v661
        %v663 = vrot.slane %v649, %v662
        %v664 = vcombine.low %v641, %v656
        %v665 = vcombine.high %v641, %v656
        %v667 = vunpack.c.l.s4 1934713408
        %v668 = vunpack.c.0.s8 %v667
        %v669 = vlaneseq
        %v670 = vshrl.u32 %v669, 7
        %v671 = vsub.s32 %v668, %v670
        %v672 = vrot.slane %v664, %v671
        %v674 = vunpack.c.l.s4 1934713408
        %v675 = vunpack.c.0.s8 %v674
        %v676 = vlaneseq
        %v677 = vshrl.u32 %v676, 7
        %v678 = vsub.s32 %v675, %v677
        %v679 = vrot.slane %v665, %v678
        %v680 = vcombine.low %v648, %v663
        %v681 = vcombine.high %v648, %v663
        %v683 = vunpack.c.l.s4 1934713408
        %v684 = vunpack.c.0.s8 %v683
        %v685 = vlaneseq
        %v686 = vshrl.u32 %v685, 7
        %v687 = vsub.s32 %v684, %v686
        %v688 = vrot.slane %v680, %v687
        %v690 = vunpack.c.l.s4 1934713408
        %v691 = vunpack.c.0.s8 %v690
        %v692 = vlaneseq
        %v693 = vshrl.u32 %v692, 7
        %v694 = vsub.s32 %v691, %v693
        %v695 = vrot.slane %v681, %v694
        %v696 = vcombine.high %v672, 0.0
        %v697 = vcombine.high %v679, 0.0
        %v698 = vcombine.high %v688, 0.0
        %v699 = vcombine.high %v695, 0.0
        %v700 = vcombine.low %v324, %v458
        %v701 = vcombine.high %v324, %v458
        %v703 = vunpack.c.l.s4 1983009808
        %v704 = vunpack.c.0.s8 %v703
        %v705 = vlaneseq
        %v706 = vshrl.u32 %v705, 7
        %v707 = vsub.s32 %v704, %v706
        %v708 = vrot.slane %v700, %v707
        %v710 = vunpack.c.l.s4 1983009808
        %v711 = vunpack.c.0.s8 %v710
        %v712 = vlaneseq
        %v713 = vshrl.u32 %v712, 7
        %v714 = vsub.s32 %v711, %v713
        %v715 = vrot.slane %v701, %v714
        %v716 = vcombine.high %v410, 0.0
        %v718 = vunpack.c.l.s4 1983009808
        %v719 = vunpack.c.0.s8 %v718
        %v720 = vlaneseq
        %v721 = vshrl.u32 %v720, 7
        %v722 = vsub.s32 %v719, %v721
        %v723 = vrot.slane %v410, %v722
        %v725 = vunpack.c.l.s4 1983009808
        %v726 = vunpack.c.0.s8 %v725
        %v727 = vlaneseq
        %v728 = vshrl.u32 %v727, 7
        %v729 = vsub.s32 %v726, %v728
        %v730 = vrot.slane %v716, %v729
        %v731 = vcombine.low %v708, %v723
        %v732 = vcombine.high %v708, %v723
        %v734 = vunpack.c.l.s4 1934713408
        %v735 = vunpack.c.0.s8 %v734
        %v736 = vlaneseq
        %v737 = vshrl.u32 %v736, 7
        %v738 = vsub.s32 %v735, %v737
        %v739 = vrot.slane %v731, %v738
        %v741 = vunpack.c.l.s4 1934713408
        %v742 = vunpack.c.0.s8 %v741
        %v743 = vlaneseq
        %v744 = vshrl.u32 %v743, 7
        %v745 = vsub.s32 %v742, %v744
        %v746 = vrot.slane %v732, %v745
        %v747 = vcombine.low %v715, %v730
        %v748 = vcombine.high %v715, %v730
        %v750 = vunpack.c.l.s4 1934713408
        %v751 = vunpack.c.0.s8 %v750
        %v752 = vlaneseq
        %v753 = vshrl.u32 %v752, 7
        %v754 = vsub.s32 %v751, %v753
        %v755 = vrot.slane %v747, %v754
        %v757 = vunpack.c.l.s4 1934713408
        %v758 = vunpack.c.0.s8 %v757
        %v759 = vlaneseq
        %v760 = vshrl.u32 %v759, 7
        %v761 = vsub.s32 %v758, %v760
        %v762 = vrot.slane %v748, %v761
        %v763 = vcombine.high %v739, 0.0
        %v764 = vcombine.high %v746, 0.0
        %v765 = vcombine.high %v755, 0.0
        %v766 = vcombine.high %v762, 0.0
        %v767 = vcombine.low %v329, %v460
        %v768 = vcombine.high %v329, %v460
        %v770 = vunpack.c.l.s4 1983009808
        %v771 = vunpack.c.0.s8 %v770
        %v772 = vlaneseq
        %v773 = vshrl.u32 %v772, 7
        %v774 = vsub.s32 %v771, %v773
        %v775 = vrot.slane %v767, %v774
        %v777 = vunpack.c.l.s4 1983009808
        %v778 = vunpack.c.0.s8 %v777
        %v779 = vlaneseq
        %v780 = vshrl.u32 %v779, 7
        %v781 = vsub.s32 %v778, %v780
        %v782 = vrot.slane %v768, %v781
        %v783 = vcombine.high %v412, 0.0
        %v785 = vunpack.c.l.s4 1983009808
        %v786 = vunpack.c.0.s8 %v785
        %v787 = vlaneseq
        %v788 = vshrl.u32 %v787, 7
        %v789 = vsub.s32 %v786, %v788
        %v790 = vrot.slane %v412, %v789
        %v792 = vunpack.c.l.s4 1983009808
        %v793 = vunpack.c.0.s8 %v792
        %v794 = vlaneseq
        %v795 = vshrl.u32 %v794, 7
        %v796 = vsub.s32 %v793, %v795
        %v797 = vrot.slane %v783, %v796
        %v798 = vcombine.low %v775, %v790
        %v799 = vcombine.high %v775, %v790
        %v801 = vunpack.c.l.s4 1934713408
        %v802 = vunpack.c.0.s8 %v801
        %v803 = vlaneseq
        %v804 = vshrl.u32 %v803, 7
        %v805 = vsub.s32 %v802, %v804
        %v806 = vrot.slane %v798, %v805
        %v808 = vunpack.c.l.s4 1934713408
        %v809 = vunpack.c.0.s8 %v808
        %v810 = vlaneseq
        %v811 = vshrl.u32 %v810, 7
        %v812 = vsub.s32 %v809, %v811
        %v813 = vrot.slane %v799, %v812
        %v814 = vcombine.low %v782, %v797
        %v815 = vcombine.high %v782, %v797
        %v817 = vunpack.c.l.s4 1934713408
        %v818 = vunpack.c.0.s8 %v817
        %v819 = vlaneseq
        %v820 = vshrl.u32 %v819, 7
        %v821 = vsub.s32 %v818, %v820
        %v822 = vrot.slane %v814, %v821
        %v824 = vunpack.c.l.s4 1934713408
        %v825 = vunpack.c.0.s8 %v824
        %v826 = vlaneseq
        %v827 = vshrl.u32 %v826, 7
        %v828 = vsub.s32 %v825, %v827
        %v829 = vrot.slane %v815, %v828
        %v830 = vcombine.high %v806, 0.0
        %v831 = vcombine.high %v813, 0.0
        %v832 = vcombine.high %v822, 0.0
        %v833 = vcombine.high %v829, 0.0
        %v834 = vcombine.low %v334, %v462
        %v835 = vcombine.high %v334, %v462
        %v837 = vunpack.c.l.s4 1983009808
        %v838 = vunpack.c.0.s8 %v837
        %v839 = vlaneseq
        %v840 = vshrl.u32 %v839, 7
        %v841 = vsub.s32 %v838, %v840
        %v842 = vrot.slane %v834, %v841
        %v844 = vunpack.c.l.s4 1983009808
        %v845 = vunpack.c.0.s8 %v844
        %v846 = vlaneseq
        %v847 = vshrl.u32 %v846, 7
        %v848 = vsub.s32 %v845, %v847
        %v849 = vrot.slane %v835, %v848
        %v850 = vcombine.high %v414, 0.0
        %v852 = vunpack.c.l.s4 1983009808
        %v853 = vunpack.c.0.s8 %v852
        %v854 = vlaneseq
        %v855 = vshrl.u32 %v854, 7
        %v856 = vsub.s32 %v853, %v855
        %v857 = vrot.slane %v414, %v856
        %v859 = vunpack.c.l.s4 1983009808
        %v860 = vunpack.c.0.s8 %v859
        %v861 = vlaneseq
        %v862 = vshrl.u32 %v861, 7
        %v863 = vsub.s32 %v860, %v862
        %v864 = vrot.slane %v850, %v863
        %v865 = vcombine.low %v842, %v857
        %v866 = vcombine.high %v842, %v857
        %v868 = vunpack.c.l.s4 1934713408
        %v869 = vunpack.c.0.s8 %v868
        %v870 = vlaneseq
        %v871 = vshrl.u32 %v870, 7
        %v872 = vsub.s32 %v869, %v871
        %v873 = vrot.slane %v865, %v872
        %v875 = vunpack.c.l.s4 1934713408
        %v876 = vunpack.c.0.s8 %v875
        %v877 = vlaneseq
        %v878 = vshrl.u32 %v877, 7
        %v879 = vsub.s32 %v876, %v878
        %v880 = vrot.slane %v866, %v879
        %v881 = vcombine.low %v849, %v864
        %v882 = vcombine.high %v849, %v864
        %v884 = vunpack.c.l.s4 1934713408
        %v885 = vunpack.c.0.s8 %v884
        %v886 = vlaneseq
        %v887 = vshrl.u32 %v886, 7
        %v888 = vsub.s32 %v885, %v887
        %v889 = vrot.slane %v881, %v888
        %v891 = vunpack.c.l.s4 1934713408
        %v892 = vunpack.c.0.s8 %v891
        %v893 = vlaneseq
        %v894 = vshrl.u32 %v893, 7
        %v895 = vsub.s32 %v892, %v894
        %v896 = vrot.slane %v882, %v895
        %v897 = vcombine.high %v873, 0.0
        %v898 = vcombine.high %v880, 0.0
        %v899 = vcombine.high %v889, 0.0
        %v900 = vcombine.high %v896, 0.0
        %v901 = vcombine.low %v339, %v464
        %v902 = vcombine.high %v339, %v464
        %v904 = vunpack.c.l.s4 1983009808
        %v905 = vunpack.c.0.s8 %v904
        %v906 = vlaneseq
        %v907 = vshrl.u32 %v906, 7
        %v908 = vsub.s32 %v905, %v907
        %v909 = vrot.slane %v901, %v908
        %v911 = vunpack.c.l.s4 1983009808
        %v912 = vunpack.c.0.s8 %v911
        %v913 = vlaneseq
        %v914 = vshrl.u32 %v913, 7
        %v915 = vsub.s32 %v912, %v914
        %v916 = vrot.slane %v902, %v915
        %v917 = vcombine.high %v416, 0.0
        %v919 = vunpack.c.l.s4 1983009808
        %v920 = vunpack.c.0.s8 %v919
        %v921 = vlaneseq
        %v922 = vshrl.u32 %v921, 7
        %v923 = vsub.s32 %v920, %v922
        %v924 = vrot.slane %v416, %v923
        %v926 = vunpack.c.l.s4 1983009808
        %v927 = vunpack.c.0.s8 %v926
        %v928 = vlaneseq
        %v929 = vshrl.u32 %v928, 7
        %v930 = vsub.s32 %v927, %v929
        %v931 = vrot.slane %v917, %v930
        %v932 = vcombine.low %v909, %v924
        %v933 = vcombine.high %v909, %v924
        %v935 = vunpack.c.l.s4 1934713408
        %v936 = vunpack.c.0.s8 %v935
        %v937 = vlaneseq
        %v938 = vshrl.u32 %v937, 7
        %v939 = vsub.s32 %v936, %v938
        %v940 = vrot.slane %v932, %v939
        %v942 = vunpack.c.l.s4 1934713408
        %v943 = vunpack.c.0.s8 %v942
        %v944 = vlaneseq
        %v945 = vshrl.u32 %v944, 7
        %v946 = vsub.s32 %v943, %v945
        %v947 = vrot.slane %v933, %v946
        %v948 = vcombine.low %v916, %v931
        %v949 = vcombine.high %v916, %v931
        %v951 = vunpack.c.l.s4 1934713408
        %v952 = vunpack.c.0.s8 %v951
        %v953 = vlaneseq
        %v954 = vshrl.u32 %v953, 7
        %v955 = vsub.s32 %v952, %v954
        %v956 = vrot.slane %v948, %v955
        %v958 = vunpack.c.l.s4 1934713408
        %v959 = vunpack.c.0.s8 %v958
        %v960 = vlaneseq
        %v961 = vshrl.u32 %v960, 7
        %v962 = vsub.s32 %v959, %v961
        %v963 = vrot.slane %v949, %v962
        %v964 = vcombine.high %v940, 0.0
        %v965 = vcombine.high %v947, 0.0
        %v966 = vcombine.high %v956, 0.0
        %v967 = vcombine.high %v963, 0.0
        %v968 = vcombine.low %v344, %v466
        %v969 = vcombine.high %v344, %v466
        %v971 = vunpack.c.l.s4 1983009808
        %v972 = vunpack.c.0.s8 %v971
        %v973 = vlaneseq
        %v974 = vshrl.u32 %v973, 7
        %v975 = vsub.s32 %v972, %v974
        %v976 = vrot.slane %v968, %v975
        %v978 = vunpack.c.l.s4 1983009808
        %v979 = vunpack.c.0.s8 %v978
        %v980 = vlaneseq
        %v981 = vshrl.u32 %v980, 7
        %v982 = vsub.s32 %v979, %v981
        %v983 = vrot.slane %v969, %v982
        %v984 = vcombine.high %v418, 0.0
        %v986 = vunpack.c.l.s4 1983009808
        %v987 = vunpack.c.0.s8 %v986
        %v988 = vlaneseq
        %v989 = vshrl.u32 %v988, 7
        %v990 = vsub.s32 %v987, %v989
        %v991 = vrot.slane %v418, %v990
        %v993 = vunpack.c.l.s4 1983009808
        %v994 = vunpack.c.0.s8 %v993
        %v995 = vlaneseq
        %v996 = vshrl.u32 %v995, 7
        %v997 = vsub.s32 %v994, %v996
        %v998 = vrot.slane %v984, %v997
        %v999 = vcombine.low %v976, %v991
        %v1000 = vcombine.high %v976, %v991
        %v1002 = vunpack.c.l.s4 1934713408
        %v1003 = vunpack.c.0.s8 %v1002
        %v1004 = vlaneseq
        %v1005 = vshrl.u32 %v1004, 7
        %v1006 = vsub.s32 %v1003, %v1005
        %v1007 = vrot.slane %v999, %v1006
        %v1009 = vunpack.c.l.s4 1934713408
        %v1010 = vunpack.c.0.s8 %v1009
        %v1011 = vlaneseq
        %v1012 = vshrl.u32 %v1011, 7
        %v1013 = vsub.s32 %v1010, %v1012
        %v1014 = vrot.slane %v1000, %v1013
        %v1015 = vcombine.low %v983, %v998
        %v1016 = vcombine.high %v983, %v998
        %v1018 = vunpack.c.l.s4 1934713408
        %v1019 = vunpack.c.0.s8 %v1018
        %v1020 = vlaneseq
        %v1021 = vshrl.u32 %v1020, 7
        %v1022 = vsub.s32 %v1019, %v1021
        %v1023 = vrot.slane %v1015, %v1022
        %v1025 = vunpack.c.l.s4 1934713408
        %v1026 = vunpack.c.0.s8 %v1025
        %v1027 = vlaneseq
        %v1028 = vshrl.u32 %v1027, 7
        %v1029 = vsub.s32 %v1026, %v1028
        %v1030 = vrot.slane %v1016, %v1029
        %v1031 = vcombine.high %v1007, 0.0
        %v1032 = vcombine.high %v1014, 0.0
        %v1033 = vcombine.high %v1023, 0.0
        %v1034 = vcombine.high %v1030, 0.0
        %v1035 = vcombine.low %v349, %v468
        %v1036 = vcombine.high %v349, %v468
        %v1038 = vunpack.c.l.s4 1983009808
        %v1039 = vunpack.c.0.s8 %v1038
        %v1040 = vlaneseq
        %v1041 = vshrl.u32 %v1040, 7
        %v1042 = vsub.s32 %v1039, %v1041
        %v1043 = vrot.slane %v1035, %v1042
        %v1045 = vunpack.c.l.s4 1983009808
        %v1046 = vunpack.c.0.s8 %v1045
        %v1047 = vlaneseq
        %v1048 = vshrl.u32 %v1047, 7
        %v1049 = vsub.s32 %v1046, %v1048
        %v1050 = vrot.slane %v1036, %v1049
        %v1051 = vcombine.high %v420, 0.0
        %v1053 = vunpack.c.l.s4 1983009808
        %v1054 = vunpack.c.0.s8 %v1053
        %v1055 = vlaneseq
        %v1056 = vshrl.u32 %v1055, 7
        %v1057 = vsub.s32 %v1054, %v1056
        %v1058 = vrot.slane %v420, %v1057
        %v1060 = vunpack.c.l.s4 1983009808
        %v1061 = vunpack.c.0.s8 %v1060
        %v1062 = vlaneseq
        %v1063 = vshrl.u32 %v1062, 7
        %v1064 = vsub.s32 %v1061, %v1063
        %v1065 = vrot.slane %v1051, %v1064
        %v1066 = vcombine.low %v1043, %v1058
        %v1067 = vcombine.high %v1043, %v1058
        %v1069 = vunpack.c.l.s4 1934713408
        %v1070 = vunpack.c.0.s8 %v1069
        %v1071 = vlaneseq
        %v1072 = vshrl.u32 %v1071, 7
        %v1073 = vsub.s32 %v1070, %v1072
        %v1074 = vrot.slane %v1066, %v1073
        %v1076 = vunpack.c.l.s4 1934713408
        %v1077 = vunpack.c.0.s8 %v1076
        %v1078 = vlaneseq
        %v1079 = vshrl.u32 %v1078, 7
        %v1080 = vsub.s32 %v1077, %v1079
        %v1081 = vrot.slane %v1067, %v1080
        %v1082 = vcombine.low %v1050, %v1065
        %v1083 = vcombine.high %v1050, %v1065
        %v1085 = vunpack.c.l.s4 1934713408
        %v1086 = vunpack.c.0.s8 %v1085
        %v1087 = vlaneseq
        %v1088 = vshrl.u32 %v1087, 7
        %v1089 = vsub.s32 %v1086, %v1088
        %v1090 = vrot.slane %v1082, %v1089
        %v1092 = vunpack.c.l.s4 1934713408
        %v1093 = vunpack.c.0.s8 %v1092
        %v1094 = vlaneseq
        %v1095 = vshrl.u32 %v1094, 7
        %v1096 = vsub.s32 %v1093, %v1095
        %v1097 = vrot.slane %v1083, %v1096
        %v1098 = vcombine.high %v1074, 0.0
        %v1099 = vcombine.high %v1081, 0.0
        %v1100 = vcombine.high %v1090, 0.0
        %v1101 = vcombine.high %v1097, 0.0
        %v1102 = vcombine.low %v354, %v470
        %v1103 = vcombine.high %v354, %v470
        %v1105 = vunpack.c.l.s4 1983009808
        %v1106 = vunpack.c.0.s8 %v1105
        %v1107 = vlaneseq
        %v1108 = vshrl.u32 %v1107, 7
        %v1109 = vsub.s32 %v1106, %v1108
        %v1110 = vrot.slane %v1102, %v1109
        %v1112 = vunpack.c.l.s4 1983009808
        %v1113 = vunpack.c.0.s8 %v1112
        %v1114 = vlaneseq
        %v1115 = vshrl.u32 %v1114, 7
        %v1116 = vsub.s32 %v1113, %v1115
        %v1117 = vrot.slane %v1103, %v1116
        %v1118 = vcombine.high %v422, 0.0
        %v1120 = vunpack.c.l.s4 1983009808
        %v1121 = vunpack.c.0.s8 %v1120
        %v1122 = vlaneseq
        %v1123 = vshrl.u32 %v1122, 7
        %v1124 = vsub.s32 %v1121, %v1123
        %v1125 = vrot.slane %v422, %v1124
        %v1127 = vunpack.c.l.s4 1983009808
        %v1128 = vunpack.c.0.s8 %v1127
        %v1129 = vlaneseq
        %v1130 = vshrl.u32 %v1129, 7
        %v1131 = vsub.s32 %v1128, %v1130
        %v1132 = vrot.slane %v1118, %v1131
        %v1133 = vcombine.low %v1110, %v1125
        %v1134 = vcombine.high %v1110, %v1125
        %v1136 = vunpack.c.l.s4 1934713408
        %v1137 = vunpack.c.0.s8 %v1136
        %v1138 = vlaneseq
        %v1139 = vshrl.u32 %v1138, 7
        %v1140 = vsub.s32 %v1137, %v1139
        %v1141 = vrot.slane %v1133, %v1140
        %v1143 = vunpack.c.l.s4 1934713408
        %v1144 = vunpack.c.0.s8 %v1143
        %v1145 = vlaneseq
        %v1146 = vshrl.u32 %v1145, 7
        %v1147 = vsub.s32 %v1144, %v1146
        %v1148 = vrot.slane %v1134, %v1147
        %v1149 = vcombine.low %v1117, %v1132
        %v1150 = vcombine.high %v1117, %v1132
        %v1152 = vunpack.c.l.s4 1934713408
        %v1153 = vunpack.c.0.s8 %v1152
        %v1154 = vlaneseq
        %v1155 = vshrl.u32 %v1154, 7
        %v1156 = vsub.s32 %v1153, %v1155
        %v1157 = vrot.slane %v1149, %v1156
        %v1159 = vunpack.c.l.s4 1934713408
        %v1160 = vunpack.c.0.s8 %v1159
        %v1161 = vlaneseq
        %v1162 = vshrl.u32 %v1161, 7
        %v1163 = vsub.s32 %v1160, %v1162
        %v1164 = vrot.slane %v1150, %v1163
        %v1165 = vcombine.high %v1141, 0.0
        %v1166 = vcombine.high %v1148, 0.0
        %v1167 = vcombine.high %v1157, 0.0
        %v1168 = vcombine.high %v1164, 0.0
        %v1169 = vcombine.low %v359, %v472
        %v1170 = vcombine.high %v359, %v472
        %v1172 = vunpack.c.l.s4 1983009808
        %v1173 = vunpack.c.0.s8 %v1172
        %v1174 = vlaneseq
        %v1175 = vshrl.u32 %v1174, 7
        %v1176 = vsub.s32 %v1173, %v1175
        %v1177 = vrot.slane %v1169, %v1176
        %v1179 = vunpack.c.l.s4 1983009808
        %v1180 = vunpack.c.0.s8 %v1179
        %v1181 = vlaneseq
        %v1182 = vshrl.u32 %v1181, 7
        %v1183 = vsub.s32 %v1180, %v1182
        %v1184 = vrot.slane %v1170, %v1183
        %v1185 = vcombine.high %v424, 0.0
        %v1187 = vunpack.c.l.s4 1983009808
        %v1188 = vunpack.c.0.s8 %v1187
        %v1189 = vlaneseq
        %v1190 = vshrl.u32 %v1189, 7
        %v1191 = vsub.s32 %v1188, %v1190
        %v1192 = vrot.slane %v424, %v1191
        %v1194 = vunpack.c.l.s4 1983009808
        %v1195 = vunpack.c.0.s8 %v1194
        %v1196 = vlaneseq
        %v1197 = vshrl.u32 %v1196, 7
        %v1198 = vsub.s32 %v1195, %v1197
        %v1199 = vrot.slane %v1185, %v1198
        %v1200 = vcombine.low %v1177, %v1192
        %v1201 = vcombine.high %v1177, %v1192
        %v1203 = vunpack.c.l.s4 1934713408
        %v1204 = vunpack.c.0.s8 %v1203
        %v1205 = vlaneseq
        %v1206 = vshrl.u32 %v1205, 7
        %v1207 = vsub.s32 %v1204, %v1206
        %v1208 = vrot.slane %v1200, %v1207
        %v1210 = vunpack.c.l.s4 1934713408
        %v1211 = vunpack.c.0.s8 %v1210
        %v1212 = vlaneseq
        %v1213 = vshrl.u32 %v1212, 7
        %v1214 = vsub.s32 %v1211, %v1213
        %v1215 = vrot.slane %v1201, %v1214
        %v1216 = vcombine.low %v1184, %v1199
        %v1217 = vcombine.high %v1184, %v1199
        %v1219 = vunpack.c.l.s4 1934713408
        %v1220 = vunpack.c.0.s8 %v1219
        %v1221 = vlaneseq
        %v1222 = vshrl.u32 %v1221, 7
        %v1223 = vsub.s32 %v1220, %v1222
        %v1224 = vrot.slane %v1216, %v1223
        %v1226 = vunpack.c.l.s4 1934713408
        %v1227 = vunpack.c.0.s8 %v1226
        %v1228 = vlaneseq
        %v1229 = vshrl.u32 %v1228, 7
        %v1230 = vsub.s32 %v1227, %v1229
        %v1231 = vrot.slane %v1217, %v1230
        %v1232 = vcombine.high %v1208, 0.0
        %v1233 = vcombine.high %v1215, 0.0
        %v1234 = vcombine.high %v1224, 0.0
        %v1235 = vcombine.high %v1231, 0.0
        %v1236 = vcombine.low %v364, %v474
        %v1237 = vcombine.high %v364, %v474
        %v1239 = vunpack.c.l.s4 1983009808
        %v1240 = vunpack.c.0.s8 %v1239
        %v1241 = vlaneseq
        %v1242 = vshrl.u32 %v1241, 7
        %v1243 = vsub.s32 %v1240, %v1242
        %v1244 = vrot.slane %v1236, %v1243
        %v1246 = vunpack.c.l.s4 1983009808
        %v1247 = vunpack.c.0.s8 %v1246
        %v1248 = vlaneseq
        %v1249 = vshrl.u32 %v1248, 7
        %v1250 = vsub.s32 %v1247, %v1249
        %v1251 = vrot.slane %v1237, %v1250
        %v1252 = vcombine.high %v426, 0.0
        %v1254 = vunpack.c.l.s4 1983009808
        %v1255 = vunpack.c.0.s8 %v1254
        %v1256 = vlaneseq
        %v1257 = vshrl.u32 %v1256, 7
        %v1258 = vsub.s32 %v1255, %v1257
        %v1259 = vrot.slane %v426, %v1258
        %v1261 = vunpack.c.l.s4 1983009808
        %v1262 = vunpack.c.0.s8 %v1261
        %v1263 = vlaneseq
        %v1264 = vshrl.u32 %v1263, 7
        %v1265 = vsub.s32 %v1262, %v1264
        %v1266 = vrot.slane %v1252, %v1265
        %v1267 = vcombine.low %v1244, %v1259
        %v1268 = vcombine.high %v1244, %v1259
        %v1270 = vunpack.c.l.s4 1934713408
        %v1271 = vunpack.c.0.s8 %v1270
        %v1272 = vlaneseq
        %v1273 = vshrl.u32 %v1272, 7
        %v1274 = vsub.s32 %v1271, %v1273
        %v1275 = vrot.slane %v1267, %v1274
        %v1277 = vunpack.c.l.s4 1934713408
        %v1278 = vunpack.c.0.s8 %v1277
        %v1279 = vlaneseq
        %v1280 = vshrl.u32 %v1279, 7
        %v1281 = vsub.s32 %v1278, %v1280
        %v1282 = vrot.slane %v1268, %v1281
        %v1283 = vcombine.low %v1251, %v1266
        %v1284 = vcombine.high %v1251, %v1266
        %v1286 = vunpack.c.l.s4 1934713408
        %v1287 = vunpack.c.0.s8 %v1286
        %v1288 = vlaneseq
        %v1289 = vshrl.u32 %v1288, 7
        %v1290 = vsub.s32 %v1287, %v1289
        %v1291 = vrot.slane %v1283, %v1290
        %v1293 = vunpack.c.l.s4 1934713408
        %v1294 = vunpack.c.0.s8 %v1293
        %v1295 = vlaneseq
        %v1296 = vshrl.u32 %v1295, 7
        %v1297 = vsub.s32 %v1294, %v1296
        %v1298 = vrot.slane %v1284, %v1297
        %v1299 = vcombine.high %v1275, 0.0
        %v1300 = vcombine.high %v1282, 0.0
        %v1301 = vcombine.high %v1291, 0.0
        %v1302 = vcombine.high %v1298, 0.0
        %v1303 = vcombine.low %v369, %v476
        %v1304 = vcombine.high %v369, %v476
        %v1306 = vunpack.c.l.s4 1983009808
        %v1307 = vunpack.c.0.s8 %v1306
        %v1308 = vlaneseq
        %v1309 = vshrl.u32 %v1308, 7
        %v1310 = vsub.s32 %v1307, %v1309
        %v1311 = vrot.slane %v1303, %v1310
        %v1313 = vunpack.c.l.s4 1983009808
        %v1314 = vunpack.c.0.s8 %v1313
        %v1315 = vlaneseq
        %v1316 = vshrl.u32 %v1315, 7
        %v1317 = vsub.s32 %v1314, %v1316
        %v1318 = vrot.slane %v1304, %v1317
        %v1319 = vcombine.high %v428, 0.0
        %v1321 = vunpack.c.l.s4 1983009808
        %v1322 = vunpack.c.0.s8 %v1321
        %v1323 = vlaneseq
        %v1324 = vshrl.u32 %v1323, 7
        %v1325 = vsub.s32 %v1322, %v1324
        %v1326 = vrot.slane %v428, %v1325
        %v1328 = vunpack.c.l.s4 1983009808
        %v1329 = vunpack.c.0.s8 %v1328
        %v1330 = vlaneseq
        %v1331 = vshrl.u32 %v1330, 7
        %v1332 = vsub.s32 %v1329, %v1331
        %v1333 = vrot.slane %v1319, %v1332
        %v1334 = vcombine.low %v1311, %v1326
        %v1335 = vcombine.high %v1311, %v1326
        %v1337 = vunpack.c.l.s4 1934713408
        %v1338 = vunpack.c.0.s8 %v1337
        %v1339 = vlaneseq
        %v1340 = vshrl.u32 %v1339, 7
        %v1341 = vsub.s32 %v1338, %v1340
        %v1342 = vrot.slane %v1334, %v1341
        %v1344 = vunpack.c.l.s4 1934713408
        %v1345 = vunpack.c.0.s8 %v1344
        %v1346 = vlaneseq
        %v1347 = vshrl.u32 %v1346, 7
        %v1348 = vsub.s32 %v1345, %v1347
        %v1349 = vrot.slane %v1335, %v1348
        %v1350 = vcombine.low %v1318, %v1333
        %v1351 = vcombine.high %v1318, %v1333
        %v1353 = vunpack.c.l.s4 1934713408
        %v1354 = vunpack.c.0.s8 %v1353
        %v1355 = vlaneseq
        %v1356 = vshrl.u32 %v1355, 7
        %v1357 = vsub.s32 %v1354, %v1356
        %v1358 = vrot.slane %v1350, %v1357
        %v1360 = vunpack.c.l.s4 1934713408
        %v1361 = vunpack.c.0.s8 %v1360
        %v1362 = vlaneseq
        %v1363 = vshrl.u32 %v1362, 7
        %v1364 = vsub.s32 %v1361, %v1363
        %v1365 = vrot.slane %v1351, %v1364
        %v1366 = vcombine.high %v1342, 0.0
        %v1367 = vcombine.high %v1349, 0.0
        %v1368 = vcombine.high %v1358, 0.0
        %v1369 = vcombine.high %v1365, 0.0
        %v1370 = vcombine.low %v374, %v478
        %v1371 = vcombine.high %v374, %v478
        %v1373 = vunpack.c.l.s4 1983009808
        %v1374 = vunpack.c.0.s8 %v1373
        %v1375 = vlaneseq
        %v1376 = vshrl.u32 %v1375, 7
        %v1377 = vsub.s32 %v1374, %v1376
        %v1378 = vrot.slane %v1370, %v1377
        %v1380 = vunpack.c.l.s4 1983009808
        %v1381 = vunpack.c.0.s8 %v1380
        %v1382 = vlaneseq
        %v1383 = vshrl.u32 %v1382, 7
        %v1384 = vsub.s32 %v1381, %v1383
        %v1385 = vrot.slane %v1371, %v1384
        %v1386 = vcombine.high %v430, 0.0
        %v1388 = vunpack.c.l.s4 1983009808
        %v1389 = vunpack.c.0.s8 %v1388
        %v1390 = vlaneseq
        %v1391 = vshrl.u32 %v1390, 7
        %v1392 = vsub.s32 %v1389, %v1391
        %v1393 = vrot.slane %v430, %v1392
        %v1395 = vunpack.c.l.s4 1983009808
        %v1396 = vunpack.c.0.s8 %v1395
        %v1397 = vlaneseq
        %v1398 = vshrl.u32 %v1397, 7
        %v1399 = vsub.s32 %v1396, %v1398
        %v1400 = vrot.slane %v1386, %v1399
        %v1401 = vcombine.low %v1378, %v1393
        %v1402 = vcombine.high %v1378, %v1393
        %v1404 = vunpack.c.l.s4 1934713408
        %v1405 = vunpack.c.0.s8 %v1404
        %v1406 = vlaneseq
        %v1407 = vshrl.u32 %v1406, 7
        %v1408 = vsub.s32 %v1405, %v1407
        %v1409 = vrot.slane %v1401, %v1408
        %v1411 = vunpack.c.l.s4 1934713408
        %v1412 = vunpack.c.0.s8 %v1411
        %v1413 = vlaneseq
        %v1414 = vshrl.u32 %v1413, 7
        %v1415 = vsub.s32 %v1412, %v1414
        %v1416 = vrot.slane %v1402, %v1415
        %v1417 = vcombine.low %v1385, %v1400
        %v1418 = vcombine.high %v1385, %v1400
        %v1420 = vunpack.c.l.s4 1934713408
        %v1421 = vunpack.c.0.s8 %v1420
        %v1422 = vlaneseq
        %v1423 = vshrl.u32 %v1422, 7
        %v1424 = vsub.s32 %v1421, %v1423
        %v1425 = vrot.slane %v1417, %v1424
        %v1427 = vunpack.c.l.s4 1934713408
        %v1428 = vunpack.c.0.s8 %v1427
        %v1429 = vlaneseq
        %v1430 = vshrl.u32 %v1429, 7
        %v1431 = vsub.s32 %v1428, %v1430
        %v1432 = vrot.slane %v1418, %v1431
        %v1433 = vcombine.high %v1409, 0.0
        %v1434 = vcombine.high %v1416, 0.0
        %v1435 = vcombine.high %v1425, 0.0
        %v1436 = vcombine.high %v1432, 0.0
        %v1437 = vcombine.low %v379, %v480
        %v1438 = vcombine.high %v379, %v480
        %v1440 = vunpack.c.l.s4 1983009808
        %v1441 = vunpack.c.0.s8 %v1440
        %v1442 = vlaneseq
        %v1443 = vshrl.u32 %v1442, 7
        %v1444 = vsub.s32 %v1441, %v1443
        %v1445 = vrot.slane %v1437, %v1444
        %v1447 = vunpack.c.l.s4 1983009808
        %v1448 = vunpack.c.0.s8 %v1447
        %v1449 = vlaneseq
        %v1450 = vshrl.u32 %v1449, 7
        %v1451 = vsub.s32 %v1448, %v1450
        %v1452 = vrot.slane %v1438, %v1451
        %v1453 = vcombine.high %v432, 0.0
        %v1455 = vunpack.c.l.s4 1983009808
        %v1456 = vunpack.c.0.s8 %v1455
        %v1457 = vlaneseq
        %v1458 = vshrl.u32 %v1457, 7
        %v1459 = vsub.s32 %v1456, %v1458
        %v1460 = vrot.slane %v432, %v1459
        %v1462 = vunpack.c.l.s4 1983009808
        %v1463 = vunpack.c.0.s8 %v1462
        %v1464 = vlaneseq
        %v1465 = vshrl.u32 %v1464, 7
        %v1466 = vsub.s32 %v1463, %v1465
        %v1467 = vrot.slane %v1453, %v1466
        %v1468 = vcombine.low %v1445, %v1460
        %v1469 = vcombine.high %v1445, %v1460
        %v1471 = vunpack.c.l.s4 1934713408
        %v1472 = vunpack.c.0.s8 %v1471
        %v1473 = vlaneseq
        %v1474 = vshrl.u32 %v1473, 7
        %v1475 = vsub.s32 %v1472, %v1474
        %v1476 = vrot.slane %v1468, %v1475
        %v1478 = vunpack.c.l.s4 1934713408
        %v1479 = vunpack.c.0.s8 %v1478
        %v1480 = vlaneseq
        %v1481 = vshrl.u32 %v1480, 7
        %v1482 = vsub.s32 %v1479, %v1481
        %v1483 = vrot.slane %v1469, %v1482
        %v1484 = vcombine.low %v1452, %v1467
        %v1485 = vcombine.high %v1452, %v1467
        %v1487 = vunpack.c.l.s4 1934713408
        %v1488 = vunpack.c.0.s8 %v1487
        %v1489 = vlaneseq
        %v1490 = vshrl.u32 %v1489, 7
        %v1491 = vsub.s32 %v1488, %v1490
        %v1492 = vrot.slane %v1484, %v1491
        %v1494 = vunpack.c.l.s4 1934713408
        %v1495 = vunpack.c.0.s8 %v1494
        %v1496 = vlaneseq
        %v1497 = vshrl.u32 %v1496, 7
        %v1498 = vsub.s32 %v1495, %v1497
        %v1499 = vrot.slane %v1485, %v1498
        %v1500 = vcombine.high %v1476, 0.0
        %v1501 = vcombine.high %v1483, 0.0
        %v1502 = vcombine.high %v1492, 0.0
        %v1503 = vcombine.high %v1499, 0.0
        %v1504 = vcombine.low %v384, %v482
        %v1505 = vcombine.high %v384, %v482
        %v1507 = vunpack.c.l.s4 1983009808
        %v1508 = vunpack.c.0.s8 %v1507
        %v1509 = vlaneseq
        %v1510 = vshrl.u32 %v1509, 7
        %v1511 = vsub.s32 %v1508, %v1510
        %v1512 = vrot.slane %v1504, %v1511
        %v1514 = vunpack.c.l.s4 1983009808
        %v1515 = vunpack.c.0.s8 %v1514
        %v1516 = vlaneseq
        %v1517 = vshrl.u32 %v1516, 7
        %v1518 = vsub.s32 %v1515, %v1517
        %v1519 = vrot.slane %v1505, %v1518
        %v1520 = vcombine.high %v434, 0.0
        %v1522 = vunpack.c.l.s4 1983009808
        %v1523 = vunpack.c.0.s8 %v1522
        %v1524 = vlaneseq
        %v1525 = vshrl.u32 %v1524, 7
        %v1526 = vsub.s32 %v1523, %v1525
        %v1527 = vrot.slane %v434, %v1526
        %v1529 = vunpack.c.l.s4 1983009808
        %v1530 = vunpack.c.0.s8 %v1529
        %v1531 = vlaneseq
        %v1532 = vshrl.u32 %v1531, 7
        %v1533 = vsub.s32 %v1530, %v1532
        %v1534 = vrot.slane %v1520, %v1533
        %v1535 = vcombine.low %v1512, %v1527
        %v1536 = vcombine.high %v1512, %v1527
        %v1538 = vunpack.c.l.s4 1934713408
        %v1539 = vunpack.c.0.s8 %v1538
        %v1540 = vlaneseq
        %v1541 = vshrl.u32 %v1540, 7
        %v1542 = vsub.s32 %v1539, %v1541
        %v1543 = vrot.slane %v1535, %v1542
        %v1545 = vunpack.c.l.s4 1934713408
        %v1546 = vunpack.c.0.s8 %v1545
        %v1547 = vlaneseq
        %v1548 = vshrl.u32 %v1547, 7
        %v1549 = vsub.s32 %v1546, %v1548
        %v1550 = vrot.slane %v1536, %v1549
        %v1551 = vcombine.low %v1519, %v1534
        %v1552 = vcombine.high %v1519, %v1534
        %v1554 = vunpack.c.l.s4 1934713408
        %v1555 = vunpack.c.0.s8 %v1554
        %v1556 = vlaneseq
        %v1557 = vshrl.u32 %v1556, 7
        %v1558 = vsub.s32 %v1555, %v1557
        %v1559 = vrot.slane %v1551, %v1558
        %v1561 = vunpack.c.l.s4 1934713408
        %v1562 = vunpack.c.0.s8 %v1561
        %v1563 = vlaneseq
        %v1564 = vshrl.u32 %v1563, 7
        %v1565 = vsub.s32 %v1562, %v1564
        %v1566 = vrot.slane %v1552, %v1565
        %v1567 = vcombine.high %v1543, 0.0
        %v1568 = vcombine.high %v1550, 0.0
        %v1569 = vcombine.high %v1559, 0.0
        %v1570 = vcombine.high %v1566, 0.0
        %v1571 = vcombine.low %v538, %v806
        %v1573 = vunpack.c.l.s4 1983009808
        %v1574 = vunpack.c.0.s8 %v1573
        %v1575 = vlaneseq
        %v1576 = vshrl.u32 %v1575, 7
        %v1577 = vsub.s32 %v1574, %v1576
        %v1578 = vrot.slane %v1571, %v1577
        %v1579 = vcombine.low %v672, %v940
        %v1581 = vunpack.c.l.s4 1983009808
        %v1582 = vunpack.c.0.s8 %v1581
        %v1583 = vlaneseq
        %v1584 = vshrl.u32 %v1583, 7
        %v1585 = vsub.s32 %v1582, %v1584
        %v1586 = vrot.slane %v1579, %v1585
        %v1587 = vcombine.low %v1074, %v1342
        %v1589 = vunpack.c.l.s4 1983009808
        %v1590 = vunpack.c.0.s8 %v1589
        %v1591 = vlaneseq
        %v1592 = vshrl.u32 %v1591, 7
        %v1593 = vsub.s32 %v1590, %v1592
        %v1594 = vrot.slane %v1587, %v1593
        %v1595 = vcombine.low %v1208, %v1476
        %v1597 = vunpack.c.l.s4 1983009808
        %v1598 = vunpack.c.0.s8 %v1597
        %v1599 = vlaneseq
        %v1600 = vshrl.u32 %v1599, 7
        %v1601 = vsub.s32 %v1598, %v1600
        %v1602 = vrot.slane %v1595, %v1601
        %v1603 = vcombine.low %v1578, %v1586
        %v1604 = vcombine.high %v1578, %v1586
        %v1606 = vunpack.c.l.s4 1934713408
        %v1607 = vunpack.c.0.s8 %v1606
        %v1608 = vlaneseq
        %v1609 = vshrl.u32 %v1608, 7
        %v1610 = vsub.s32 %v1607, %v1609
        %v1611 = vrot.slane %v1603, %v1610
        %v1613 = vunpack.c.l.s4 1934713408
        %v1614 = vunpack.c.0.s8 %v1613
        %v1615 = vlaneseq
        %v1616 = vshrl.u32 %v1615, 7
        %v1617 = vsub.s32 %v1614, %v1616
        %v1618 = vrot.slane %v1604, %v1617
        %v1619 = vcombine.low %v1594, %v1602
        %v1620 = vcombine.high %v1594, %v1602
        %v1622 = vunpack.c.l.s4 1934713408
        %v1623 = vunpack.c.0.s8 %v1622
        %v1624 = vlaneseq
        %v1625 = vshrl.u32 %v1624, 7
        %v1626 = vsub.s32 %v1623, %v1625
        %v1627 = vrot.slane %v1619, %v1626
        %v1629 = vunpack.c.l.s4 1934713408
        %v1630 = vunpack.c.0.s8 %v1629
        %v1631 = vlaneseq
        %v1632 = vshrl.u32 %v1631, 7
        %v1633 = vsub.s32 %v1630, %v1632
        %v1634 = vrot.slane %v1620, %v1633
        %v1635 = vcombine.low %v1611, %v1627
        %v1636 = vcombine.high %v1611, %v1627
        %v1637 = vcombine.low %v1618, %v1634
        %v1638 = vcombine.low %v562, %v830
        %v1640 = vunpack.c.l.s4 1983009808
        %v1641 = vunpack.c.0.s8 %v1640
        %v1642 = vlaneseq
        %v1643 = vshrl.u32 %v1642, 7
        %v1644 = vsub.s32 %v1641, %v1643
        %v1645 = vrot.slane %v1638, %v1644
        %v1646 = vcombine.low %v696, %v964
        %v1648 = vunpack.c.l.s4 1983009808
        %v1649 = vunpack.c.0.s8 %v1648
        %v1650 = vlaneseq
        %v1651 = vshrl.u32 %v1650, 7
        %v1652 = vsub.s32 %v1649, %v1651
        %v1653 = vrot.slane %v1646, %v1652
        %v1654 = vcombine.low %v1098, %v1366
        %v1656 = vunpack.c.l.s4 1983009808
        %v1657 = vunpack.c.0.s8 %v1656
        %v1658 = vlaneseq
        %v1659 = vshrl.u32 %v1658, 7
        %v1660 = vsub.s32 %v1657, %v1659
        %v1661 = vrot.slane %v1654, %v1660
        %v1662 = vcombine.low %v1232, %v1500
        %v1664 = vunpack.c.l.s4 1983009808
        %v1665 = vunpack.c.0.s8 %v1664
        %v1666 = vlaneseq
        %v1667 = vshrl.u32 %v1666, 7
        %v1668 = vsub.s32 %v1665, %v1667
        %v1669 = vrot.slane %v1662, %v1668
        %v1670 = vcombine.low %v1645, %v1653
        %v1671 = vcombine.high %v1645, %v1653
        %v1673 = vunpack.c.l.s4 1934713408
        %v1674 = vunpack.c.0.s8 %v1673
        %v1675 = vlaneseq
        %v1676 = vshrl.u32 %v1675, 7
        %v1677 = vsub.s32 %v1674, %v1676
        %v1678 = vrot.slane %v1670, %v1677
        %v1680 = vunpack.c.l.s4 1934713408
        %v1681 = vunpack.c.0.s8 %v1680
        %v1682 = vlaneseq
        %v1683 = vshrl.u32 %v1682, 7
        %v1684 = vsub.s32 %v1681, %v1683
        %v1685 = vrot.slane %v1671, %v1684
        %v1686 = vcombine.low %v1661, %v1669
        %v1687 = vcombine.high %v1661, %v1669
        %v1689 = vunpack.c.l.s4 1934713408
        %v1690 = vunpack.c.0.s8 %v1689
        %v1691 = vlaneseq
        %v1692 = vshrl.u32 %v1691, 7
        %v1693 = vsub.s32 %v1690, %v1692
        %v1694 = vrot.slane %v1686, %v1693
        %v1696 = vunpack.c.l.s4 1934713408
        %v1697 = vunpack.c.0.s8 %v1696
        %v1698 = vlaneseq
        %v1699 = vshrl.u32 %v1698, 7
        %v1700 = vsub.s32 %v1697, %v1699
        %v1701 = vrot.slane %v1687, %v1700
        %v1702 = vcombine.low %v1678, %v1694
        %v1703 = vcombine.high %v1678, %v1694
        %v1704 = vcombine.low %v1685, %v1701
        %v1705 = vcombine.low %v545, %v813
        %v1707 = vunpack.c.l.s4 1983009808
        %v1708 = vunpack.c.0.s8 %v1707
        %v1709 = vlaneseq
        %v1710 = vshrl.u32 %v1709, 7
        %v1711 = vsub.s32 %v1708, %v1710
        %v1712 = vrot.slane %v1705, %v1711
        %v1713 = vcombine.low %v679, %v947
        %v1715 = vunpack.c.l.s4 1983009808
        %v1716 = vunpack.c.0.s8 %v1715
        %v1717 = vlaneseq
        %v1718 = vshrl.u32 %v1717, 7
        %v1719 = vsub.s32 %v1716, %v1718
        %v1720 = vrot.slane %v1713, %v1719
        %v1721 = vcombine.low %v1081, %v1349
        %v1723 = vunpack.c.l.s4 1983009808
        %v1724 = vunpack.c.0.s8 %v1723
        %v1725 = vlaneseq
        %v1726 = vshrl.u32 %v1725, 7
        %v1727 = vsub.s32 %v1724, %v1726
        %v1728 = vrot.slane %v1721, %v1727
        %v1729 = vcombine.low %v1215, %v1483
        %v1731 = vunpack.c.l.s4 1983009808
        %v1732 = vunpack.c.0.s8 %v1731
        %v1733 = vlaneseq
        %v1734 = vshrl.u32 %v1733, 7
        %v1735 = vsub.s32 %v1732, %v1734
        %v1736 = vrot.slane %v1729, %v1735
        %v1737 = vcombine.low %v1712, %v1720
        %v1738 = vcombine.high %v1712, %v1720
        %v1740 = vunpack.c.l.s4 1934713408
        %v1741 = vunpack.c.0.s8 %v1740
        %v1742 = vlaneseq
        %v1743 = vshrl.u32 %v1742, 7
        %v1744 = vsub.s32 %v1741, %v1743
        %v1745 = vrot.slane %v1737, %v1744
        %v1747 = vunpack.c.l.s4 1934713408
        %v1748 = vunpack.c.0.s8 %v1747
        %v1749 = vlaneseq
        %v1750 = vshrl.u32 %v1749, 7
        %v1751 = vsub.s32 %v1748, %v1750
        %v1752 = vrot.slane %v1738, %v1751
        %v1753 = vcombine.low %v1728, %v1736
        %v1754 = vcombine.high %v1728, %v1736
        %v1756 = vunpack.c.l.s4 1934713408
        %v1757 = vunpack.c.0.s8 %v1756
        %v1758 = vlaneseq
        %v1759 = vshrl.u32 %v1758, 7
        %v1760 = vsub.s32 %v1757, %v1759
        %v1761 = vrot.slane %v1753, %v1760
        %v1763 = vunpack.c.l.s4 1934713408
        %v1764 = vunpack.c.0.s8 %v1763
        %v1765 = vlaneseq
        %v1766 = vshrl.u32 %v1765, 7
        %v1767 = vsub.s32 %v1764, %v1766
        %v1768 = vrot.slane %v1754, %v1767
        %v1769 = vcombine.low %v1745, %v1761
        %v1770 = vcombine.high %v1745, %v1761
        %v1771 = vcombine.low %v1752, %v1768
        %v1772 = vcombine.low %v563, %v831
        %v1774 = vunpack.c.l.s4 1983009808
        %v1775 = vunpack.c.0.s8 %v1774
        %v1776 = vlaneseq
        %v1777 = vshrl.u32 %v1776, 7
        %v1778 = vsub.s32 %v1775, %v1777
        %v1779 = vrot.slane %v1772, %v1778
        %v1780 = vcombine.low %v697, %v965
        %v1782 = vunpack.c.l.s4 1983009808
        %v1783 = vunpack.c.0.s8 %v1782
        %v1784 = vlaneseq
        %v1785 = vshrl.u32 %v1784, 7
        %v1786 = vsub.s32 %v1783, %v1785
        %v1787 = vrot.slane %v1780, %v1786
        %v1788 = vcombine.low %v1099, %v1367
        %v1790 = vunpack.c.l.s4 1983009808
        %v1791 = vunpack.c.0.s8 %v1790
        %v1792 = vlaneseq
        %v1793 = vshrl.u32 %v1792, 7
        %v1794 = vsub.s32 %v1791, %v1793
        %v1795 = vrot.slane %v1788, %v1794
        %v1796 = vcombine.low %v1233, %v1501
        %v1798 = vunpack.c.l.s4 1983009808
        %v1799 = vunpack.c.0.s8 %v1798
        %v1800 = vlaneseq
        %v1801 = vshrl.u32 %v1800, 7
        %v1802 = vsub.s32 %v1799, %v1801
        %v1803 = vrot.slane %v1796, %v1802
        %v1804 = vcombine.low %v1779, %v1787
        %v1805 = vcombine.high %v1779, %v1787
        %v1807 = vunpack.c.l.s4 1934713408
        %v1808 = vunpack.c.0.s8 %v1807
        %v1809 = vlaneseq
        %v1810 = vshrl.u32 %v1809, 7
        %v1811 = vsub.s32 %v1808, %v1810
        %v1812 = vrot.slane %v1804, %v1811
        %v1814 = vunpack.c.l.s4 1934713408
        %v1815 = vunpack.c.0.s8 %v1814
        %v1816 = vlaneseq
        %v1817 = vshrl.u32 %v1816, 7
        %v1818 = vsub.s32 %v1815, %v1817
        %v1819 = vrot.slane %v1805, %v1818
        %v1820 = vcombine.low %v1795, %v1803
        %v1821 = vcombine.high %v1795, %v1803
        %v1823 = vunpack.c.l.s4 1934713408
        %v1824 = vunpack.c.0.s8 %v1823
        %v1825 = vlaneseq
        %v1826 = vshrl.u32 %v1825, 7
        %v1827 = vsub.s32 %v1824, %v1826
        %v1828 = vrot.slane %v1820, %v1827
        %v1830 = vunpack.c.l.s4 1934713408
        %v1831 = vunpack.c.0.s8 %v1830
        %v1832 = vlaneseq
        %v1833 = vshrl.u32 %v1832, 7
        %v1834 = vsub.s32 %v1831, %v1833
        %v1835 = vrot.slane %v1821, %v1834
        %v1836 = vcombine.low %v1812, %v1828
        %v1837 = vcombine.high %v1812, %v1828
        %v1838 = vcombine.low %v1819, %v1835
        %v1839 = vcombine.low %v554, %v822
        %v1841 = vunpack.c.l.s4 1983009808
        %v1842 = vunpack.c.0.s8 %v1841
        %v1843 = vlaneseq
        %v1844 = vshrl.u32 %v1843, 7
        %v1845 = vsub.s32 %v1842, %v1844
        %v1846 = vrot.slane %v1839, %v1845
        %v1847 = vcombine.low %v688, %v956
        %v1849 = vunpack.c.l.s4 1983009808
        %v1850 = vunpack.c.0.s8 %v1849
        %v1851 = vlaneseq
        %v1852 = vshrl.u32 %v1851, 7
        %v1853 = vsub.s32 %v1850, %v1852
        %v1854 = vrot.slane %v1847, %v1853
        %v1855 = vcombine.low %v1090, %v1358
        %v1857 = vunpack.c.l.s4 1983009808
        %v1858 = vunpack.c.0.s8 %v1857
        %v1859 = vlaneseq
        %v1860 = vshrl.u32 %v1859, 7
        %v1861 = vsub.s32 %v1858, %v1860
        %v1862 = vrot.slane %v1855, %v1861
        %v1863 = vcombine.low %v1224, %v1492
        %v1865 = vunpack.c.l.s4 1983009808
        %v1866 = vunpack.c.0.s8 %v1865
        %v1867 = vlaneseq
        %v1868 = vshrl.u32 %v1867, 7
        %v1869 = vsub.s32 %v1866, %v1868
        %v1870 = vrot.slane %v1863, %v1869
        %v1871 = vcombine.low %v1846, %v1854
        %v1872 = vcombine.high %v1846, %v1854
        %v1874 = vunpack.c.l.s4 1934713408
        %v1875 = vunpack.c.0.s8 %v1874
        %v1876 = vlaneseq
        %v1877 = vshrl.u32 %v1876, 7
        %v1878 = vsub.s32 %v1875, %v1877
        %v1879 = vrot.slane %v1871, %v1878
        %v1881 = vunpack.c.l.s4 1934713408
        %v1882 = vunpack.c.0.s8 %v1881
        %v1883 = vlaneseq
        %v1884 = vshrl.u32 %v1883, 7
        %v1885 = vsub.s32 %v1882, %v1884
        %v1886 = vrot.slane %v1872, %v1885
        %v1887 = vcombine.low %v1862, %v1870
        %v1888 = vcombine.high %v1862, %v1870
        %v1890 = vunpack.c.l.s4 1934713408
        %v1891 = vunpack.c.0.s8 %v1890
        %v1892 = vlaneseq
        %v1893 = vshrl.u32 %v1892, 7
        %v1894 = vsub.s32 %v1891, %v1893
        %v1895 = vrot.slane %v1887, %v1894
        %v1897 = vunpack.c.l.s4 1934713408
        %v1898 = vunpack.c.0.s8 %v1897
        %v1899 = vlaneseq
        %v1900 = vshrl.u32 %v1899, 7
        %v1901 = vsub.s32 %v1898, %v1900
        %v1902 = vrot.slane %v1888, %v1901
        %v1903 = vcombine.low %v1879, %v1895
        %v1904 = vcombine.high %v1879, %v1895
        %v1905 = vcombine.low %v1886, %v1902
        %v1906 = vcombine.low %v564, %v832
        %v1908 = vunpack.c.l.s4 1983009808
        %v1909 = vunpack.c.0.s8 %v1908
        %v1910 = vlaneseq
        %v1911 = vshrl.u32 %v1910, 7
        %v1912 = vsub.s32 %v1909, %v1911
        %v1913 = vrot.slane %v1906, %v1912
        %v1914 = vcombine.low %v698, %v966
        %v1916 = vunpack.c.l.s4 1983009808
        %v1917 = vunpack.c.0.s8 %v1916
        %v1918 = vlaneseq
        %v1919 = vshrl.u32 %v1918, 7
        %v1920 = vsub.s32 %v1917, %v1919
        %v1921 = vrot.slane %v1914, %v1920
        %v1922 = vcombine.low %v1100, %v1368
        %v1924 = vunpack.c.l.s4 1983009808
        %v1925 = vunpack.c.0.s8 %v1924
        %v1926 = vlaneseq
        %v1927 = vshrl.u32 %v1926, 7
        %v1928 = vsub.s32 %v1925, %v1927
        %v1929 = vrot.slane %v1922, %v1928
        %v1930 = vcombine.low %v1234, %v1502
        %v1932 = vunpack.c.l.s4 1983009808
        %v1933 = vunpack.c.0.s8 %v1932
        %v1934 = vlaneseq
        %v1935 = vshrl.u32 %v1934, 7
        %v1936 = vsub.s32 %v1933, %v1935
        %v1937 = vrot.slane %v1930, %v1936
        %v1938 = vcombine.low %v1913, %v1921
        %v1939 = vcombine.high %v1913, %v1921
        %v1941 = vunpack.c.l.s4 1934713408
        %v1942 = vunpack.c.0.s8 %v1941
        %v1943 = vlaneseq
        %v1944 = vshrl.u32 %v1943, 7
        %v1945 = vsub.s32 %v1942, %v1944
        %v1946 = vrot.slane %v1938, %v1945
        %v1948 = vunpack.c.l.s4 1934713408
        %v1949 = vunpack.c.0.s8 %v1948
        %v1950 = vlaneseq
        %v1951 = vshrl.u32 %v1950, 7
        %v1952 = vsub.s32 %v1949, %v1951
        %v1953 = vrot.slane %v1939, %v1952
        %v1954 = vcombine.low %v1929, %v1937
        %v1955 = vcombine.high %v1929, %v1937
        %v1957 = vunpack.c.l.s4 1934713408
        %v1958 = vunpack.c.0.s8 %v1957
        %v1959 = vlaneseq
        %v1960 = vshrl.u32 %v1959, 7
        %v1961 = vsub.s32 %v1958, %v1960
        %v1962 = vrot.slane %v1954, %v1961
        %v1964 = vunpack.c.l.s4 1934713408
        %v1965 = vunpack.c.0.s8 %v1964
        %v1966 = vlaneseq
        %v1967 = vshrl.u32 %v1966, 7
        %v1968 = vsub.s32 %v1965, %v1967
        %v1969 = vrot.slane %v1955, %v1968
        %v1970 = vcombine.low %v1946, %v1962
        %v1971 = vcombine.high %v1946, %v1962
        %v1972 = vcombine.low %v1953, %v1969
        %v1973 = vcombine.low %v561, %v829
        %v1975 = vunpack.c.l.s4 1983009808
        %v1976 = vunpack.c.0.s8 %v1975
        %v1977 = vlaneseq
        %v1978 = vshrl.u32 %v1977, 7
        %v1979 = vsub.s32 %v1976, %v1978
        %v1980 = vrot.slane %v1973, %v1979
        %v1981 = vcombine.low %v695, %v963
        %v1983 = vunpack.c.l.s4 1983009808
        %v1984 = vunpack.c.0.s8 %v1983
        %v1985 = vlaneseq
        %v1986 = vshrl.u32 %v1985, 7
        %v1987 = vsub.s32 %v1984, %v1986
        %v1988 = vrot.slane %v1981, %v1987
        %v1989 = vcombine.low %v1097, %v1365
        %v1991 = vunpack.c.l.s4 1983009808
        %v1992 = vunpack.c.0.s8 %v1991
        %v1993 = vlaneseq
        %v1994 = vshrl.u32 %v1993, 7
        %v1995 = vsub.s32 %v1992, %v1994
        %v1996 = vrot.slane %v1989, %v1995
        %v1997 = vcombine.low %v1231, %v1499
        %v1999 = vunpack.c.l.s4 1983009808
        %v2000 = vunpack.c.0.s8 %v1999
        %v2001 = vlaneseq
        %v2002 = vshrl.u32 %v2001, 7
        %v2003 = vsub.s32 %v2000, %v2002
        %v2004 = vrot.slane %v1997, %v2003
        %v2005 = vcombine.low %v1980, %v1988
        %v2006 = vcombine.high %v1980, %v1988
        %v2008 = vunpack.c.l.s4 1934713408
        %v2009 = vunpack.c.0.s8 %v2008
        %v2010 = vlaneseq
        %v2011 = vshrl.u32 %v2010, 7
        %v2012 = vsub.s32 %v2009, %v2011
        %v2013 = vrot.slane %v2005, %v2012
        %v2015 = vunpack.c.l.s4 1934713408
        %v2016 = vunpack.c.0.s8 %v2015
        %v2017 = vlaneseq
        %v2018 = vshrl.u32 %v2017, 7
        %v2019 = vsub.s32 %v2016, %v2018
        %v2020 = vrot.slane %v2006, %v2019
        %v2021 = vcombine.low %v1996, %v2004
        %v2022 = vcombine.high %v1996, %v2004
        %v2024 = vunpack.c.l.s4 1934713408
        %v2025 = vunpack.c.0.s8 %v2024
        %v2026 = vlaneseq
        %v2027 = vshrl.u32 %v2026, 7
        %v2028 = vsub.s32 %v2025, %v2027
        %v2029 = vrot.slane %v2021, %v2028
        %v2031 = vunpack.c.l.s4 1934713408
        %v2032 = vunpack.c.0.s8 %v2031
        %v2033 = vlaneseq
        %v2034 = vshrl.u32 %v2033, 7
        %v2035 = vsub.s32 %v2032, %v2034
        %v2036 = vrot.slane %v2022, %v2035
        %v2037 = vcombine.low %v2013, %v2029
        %v2038 = vcombine.high %v2013, %v2029
        %v2039 = vcombine.low %v2020, %v2036
        %v2040 = vcombine.low %v565, %v833
        %v2042 = vunpack.c.l.s4 1983009808
        %v2043 = vunpack.c.0.s8 %v2042
        %v2044 = vlaneseq
        %v2045 = vshrl.u32 %v2044, 7
        %v2046 = vsub.s32 %v2043, %v2045
        %v2047 = vrot.slane %v2040, %v2046
        %v2048 = vcombine.low %v699, %v967
        %v2050 = vunpack.c.l.s4 1983009808
        %v2051 = vunpack.c.0.s8 %v2050
        %v2052 = vlaneseq
        %v2053 = vshrl.u32 %v2052, 7
        %v2054 = vsub.s32 %v2051, %v2053
        %v2055 = vrot.slane %v2048, %v2054
        %v2056 = vcombine.low %v1101, %v1369
        %v2058 = vunpack.c.l.s4 1983009808
        %v2059 = vunpack.c.0.s8 %v2058
        %v2060 = vlaneseq
        %v2061 = vshrl.u32 %v2060, 7
        %v2062 = vsub.s32 %v2059, %v2061
        %v2063 = vrot.slane %v2056, %v2062
        %v2064 = vcombine.low %v1235, %v1503
        %v2066 = vunpack.c.l.s4 1983009808
        %v2067 = vunpack.c.0.s8 %v2066
        %v2068 = vlaneseq
        %v2069 = vshrl.u32 %v2068, 7
        %v2070 = vsub.s32 %v2067, %v2069
        %v2071 = vrot.slane %v2064, %v2070
        %v2072 = vcombine.low %v2047, %v2055
        %v2073 = vcombine.high %v2047, %v2055
        %v2075 = vunpack.c.l.s4 1934713408
        %v2076 = vunpack.c.0.s8 %v2075
        %v2077 = vlaneseq
        %v2078 = vshrl.u32 %v2077, 7
        %v2079 = vsub.s32 %v2076, %v2078
        %v2080 = vrot.slane %v2072, %v2079
        %v2082 = vunpack.c.l.s4 1934713408
        %v2083 = vunpack.c.0.s8 %v2082
        %v2084 = vlaneseq
        %v2085 = vshrl.u32 %v2084, 7
        %v2086 = vsub.s32 %v2083, %v2085
        %v2087 = vrot.slane %v2073, %v2086
        %v2088 = vcombine.low %v2063, %v2071
        %v2089 = vcombine.high %v2063, %v2071
        %v2091 = vunpack.c.l.s4 1934713408
        %v2092 = vunpack.c.0.s8 %v2091
        %v2093 = vlaneseq
        %v2094 = vshrl.u32 %v2093, 7
        %v2095 = vsub.s32 %v2092, %v2094
        %v2096 = vrot.slane %v2088, %v2095
        %v2098 = vunpack.c.l.s4 1934713408
        %v2099 = vunpack.c.0.s8 %v2098
        %v2100 = vlaneseq
        %v2101 = vshrl.u32 %v2100, 7
        %v2102 = vsub.s32 %v2099, %v2101
        %v2103 = vrot.slane %v2089, %v2102
        %v2104 = vcombine.low %v2080, %v2096
        %v2105 = vcombine.high %v2080, %v2096
        %v2106 = vcombine.low %v2087, %v2103
        %v2107 = vcombine.low %v605, %v873
        %v2109 = vunpack.c.l.s4 1983009808
        %v2110 = vunpack.c.0.s8 %v2109
        %v2111 = vlaneseq
        %v2112 = vshrl.u32 %v2111, 7
        %v2113 = vsub.s32 %v2110, %v2112
        %v2114 = vrot.slane %v2107, %v2113
        %v2115 = vcombine.low %v739, %v1007
        %v2117 = vunpack.c.l.s4 1983009808
        %v2118 = vunpack.c.0.s8 %v2117
        %v2119 = vlaneseq
        %v2120 = vshrl.u32 %v2119, 7
        %v2121 = vsub.s32 %v2118, %v2120
        %v2122 = vrot.slane %v2115, %v2121
        %v2123 = vcombine.low %v1141, %v1409
        %v2125 = vunpack.c.l.s4 1983009808
        %v2126 = vunpack.c.0.s8 %v2125
        %v2127 = vlaneseq
        %v2128 = vshrl.u32 %v2127, 7
        %v2129 = vsub.s32 %v2126, %v2128
        %v2130 = vrot.slane %v2123, %v2129
        %v2131 = vcombine.low %v1275, %v1543
        %v2133 = vunpack.c.l.s4 1983009808
        %v2134 = vunpack.c.0.s8 %v2133
        %v2135 = vlaneseq
        %v2136 = vshrl.u32 %v2135, 7
        %v2137 = vsub.s32 %v2134, %v2136
        %v2138 = vrot.slane %v2131, %v2137
        %v2139 = vcombine.low %v2114, %v2122
        %v2140 = vcombine.high %v2114, %v2122
        %v2142 = vunpack.c.l.s4 1934713408
        %v2143 = vunpack.c.0.s8 %v2142
        %v2144 = vlaneseq
        %v2145 = vshrl.u32 %v2144, 7
        %v2146 = vsub.s32 %v2143, %v2145
        %v2147 = vrot.slane %v2139, %v2146
        %v2149 = vunpack.c.l.s4 1934713408
        %v2150 = vunpack.c.0.s8 %v2149
        %v2151 = vlaneseq
        %v2152 = vshrl.u32 %v2151, 7
        %v2153 = vsub.s32 %v2150, %v2152
        %v2154 = vrot.slane %v2140, %v2153
        %v2155 = vcombine.low %v2130, %v2138
        %v2156 = vcombine.high %v2130, %v2138
        %v2158 = vunpack.c.l.s4 1934713408
        %v2159 = vunpack.c.0.s8 %v2158
        %v2160 = vlaneseq
        %v2161 = vshrl.u32 %v2160, 7
        %v2162 = vsub.s32 %v2159, %v2161
        %v2163 = vrot.slane %v2155, %v2162
        %v2165 = vunpack.c.l.s4 1934713408
        %v2166 = vunpack.c.0.s8 %v2165
        %v2167 = vlaneseq
        %v2168 = vshrl.u32 %v2167, 7
        %v2169 = vsub.s32 %v2166, %v2168
        %v2170 = vrot.slane %v2156, %v2169
        %v2171 = vcombine.low %v2147, %v2163
        %v2172 = vcombine.high %v2147, %v2163
        %v2173 = vcombine.low %v2154, %v2170
        %v2174 = vcombine.low %v629, %v897
        %v2176 = vunpack.c.l.s4 1983009808
        %v2177 = vunpack.c.0.s8 %v2176
        %v2178 = vlaneseq
        %v2179 = vshrl.u32 %v2178, 7
        %v2180 = vsub.s32 %v2177, %v2179
        %v2181 = vrot.slane %v2174, %v2180
        %v2182 = vcombine.low %v763, %v1031
        %v2184 = vunpack.c.l.s4 1983009808
        %v2185 = vunpack.c.0.s8 %v2184
        %v2186 = vlaneseq
        %v2187 = vshrl.u32 %v2186, 7
        %v2188 = vsub.s32 %v2185, %v2187
        %v2189 = vrot.slane %v2182, %v2188
        %v2190 = vcombine.low %v1165, %v1433
        %v2192 = vunpack.c.l.s4 1983009808
        %v2193 = vunpack.c.0.s8 %v2192
        %v2194 = vlaneseq
        %v2195 = vshrl.u32 %v2194, 7
        %v2196 = vsub.s32 %v2193, %v2195
        %v2197 = vrot.slane %v2190, %v2196
        %v2198 = vcombine.low %v1299, %v1567
        %v2200 = vunpack.c.l.s4 1983009808
        %v2201 = vunpack.c.0.s8 %v2200
        %v2202 = vlaneseq
        %v2203 = vshrl.u32 %v2202, 7
        %v2204 = vsub.s32 %v2201, %v2203
        %v2205 = vrot.slane %v2198, %v2204
        %v2206 = vcombine.low %v2181, %v2189
        %v2207 = vcombine.high %v2181, %v2189
        %v2209 = vunpack.c.l.s4 1934713408
        %v2210 = vunpack.c.0.s8 %v2209
        %v2211 = vlaneseq
        %v2212 = vshrl.u32 %v2211, 7
        %v2213 = vsub.s32 %v2210, %v2212
        %v2214 = vrot.slane %v2206, %v2213
        %v2216 = vunpack.c.l.s4 1934713408
        %v2217 = vunpack.c.0.s8 %v2216
        %v2218 = vlaneseq
        %v2219 = vshrl.u32 %v2218, 7
        %v2220 = vsub.s32 %v2217, %v2219
        %v2221 = vrot.slane %v2207, %v2220
        %v2222 = vcombine.low %v2197, %v2205
        %v2223 = vcombine.high %v2197, %v2205
        %v2225 = vunpack.c.l.s4 1934713408
        %v2226 = vunpack.c.0.s8 %v2225
        %v2227 = vlaneseq
        %v2228 = vshrl.u32 %v2227, 7
        %v2229 = vsub.s32 %v2226, %v2228
        %v2230 = vrot.slane %v2222, %v2229
        %v2232 = vunpack.c.l.s4 1934713408
        %v2233 = vunpack.c.0.s8 %v2232
        %v2234 = vlaneseq
        %v2235 = vshrl.u32 %v2234, 7
        %v2236 = vsub.s32 %v2233, %v2235
        %v2237 = vrot.slane %v2223, %v2236
        %v2238 = vcombine.low %v2214, %v2230
        %v2239 = vcombine.high %v2214, %v2230
        %v2240 = vcombine.low %v2221, %v2237
        %v2241 = vcombine.low %v612, %v880
        %v2243 = vunpack.c.l.s4 1983009808
        %v2244 = vunpack.c.0.s8 %v2243
        %v2245 = vlaneseq
        %v2246 = vshrl.u32 %v2245, 7
        %v2247 = vsub.s32 %v2244, %v2246
        %v2248 = vrot.slane %v2241, %v2247
        %v2249 = vcombine.low %v746, %v1014
        %v2251 = vunpack.c.l.s4 1983009808
        %v2252 = vunpack.c.0.s8 %v2251
        %v2253 = vlaneseq
        %v2254 = vshrl.u32 %v2253, 7
        %v2255 = vsub.s32 %v2252, %v2254
        %v2256 = vrot.slane %v2249, %v2255
        %v2257 = vcombine.low %v1148, %v1416
        %v2259 = vunpack.c.l.s4 1983009808
        %v2260 = vunpack.c.0.s8 %v2259
        %v2261 = vlaneseq
        %v2262 = vshrl.u32 %v2261, 7
        %v2263 = vsub.s32 %v2260, %v2262
        %v2264 = vrot.slane %v2257, %v2263
        %v2265 = vcombine.low %v1282, %v1550
        %v2267 = vunpack.c.l.s4 1983009808
        %v2268 = vunpack.c.0.s8 %v2267
        %v2269 = vlaneseq
        %v2270 = vshrl.u32 %v2269, 7
        %v2271 = vsub.s32 %v2268, %v2270
        %v2272 = vrot.slane %v2265, %v2271
        %v2273 = vcombine.low %v2248, %v2256
        %v2274 = vcombine.high %v2248, %v2256
        %v2276 = vunpack.c.l.s4 1934713408
        %v2277 = vunpack.c.0.s8 %v2276
        %v2278 = vlaneseq
        %v2279 = vshrl.u32 %v2278, 7
        %v2280 = vsub.s32 %v2277, %v2279
        %v2281 = vrot.slane %v2273, %v2280
        %v2283 = vunpack.c.l.s4 1934713408
        %v2284 = vunpack.c.0.s8 %v2283
        %v2285 = vlaneseq
        %v2286 = vshrl.u32 %v2285, 7
        %v2287 = vsub.s32 %v2284, %v2286
        %v2288 = vrot.slane %v2274, %v2287
        %v2289 = vcombine.low %v2264, %v2272
        %v2290 = vcombine.high %v2264, %v2272
        %v2292 = vunpack.c.l.s4 1934713408
        %v2293 = vunpack.c.0.s8 %v2292
        %v2294 = vlaneseq
        %v2295 = vshrl.u32 %v2294, 7
        %v2296 = vsub.s32 %v2293, %v2295
        %v2297 = vrot.slane %v2289, %v2296
        %v2299 = vunpack.c.l.s4 1934713408
        %v2300 = vunpack.c.0.s8 %v2299
        %v2301 = vlaneseq
        %v2302 = vshrl.u32 %v2301, 7
        %v2303 = vsub.s32 %v2300, %v2302
        %v2304 = vrot.slane %v2290, %v2303
        %v2305 = vcombine.low %v2281, %v2297
        %v2306 = vcombine.high %v2281, %v2297
        %v2307 = vcombine.low %v2288, %v2304
        %v2308 = vcombine.low %v630, %v898
        %v2310 = vunpack.c.l.s4 1983009808
        %v2311 = vunpack.c.0.s8 %v2310
        %v2312 = vlaneseq
        %v2313 = vshrl.u32 %v2312, 7
        %v2314 = vsub.s32 %v2311, %v2313
        %v2315 = vrot.slane %v2308, %v2314
        %v2316 = vcombine.low %v764, %v1032
        %v2318 = vunpack.c.l.s4 1983009808
        %v2319 = vunpack.c.0.s8 %v2318
        %v2320 = vlaneseq
        %v2321 = vshrl.u32 %v2320, 7
        %v2322 = vsub.s32 %v2319, %v2321
        %v2323 = vrot.slane %v2316, %v2322
        %v2324 = vcombine.low %v1166, %v1434
        %v2326 = vunpack.c.l.s4 1983009808
        %v2327 = vunpack.c.0.s8 %v2326
        %v2328 = vlaneseq
        %v2329 = vshrl.u32 %v2328, 7
        %v2330 = vsub.s32 %v2327, %v2329
        %v2331 = vrot.slane %v2324, %v2330
        %v2332 = vcombine.low %v1300, %v1568
        %v2334 = vunpack.c.l.s4 1983009808
        %v2335 = vunpack.c.0.s8 %v2334
        %v2336 = vlaneseq
        %v2337 = vshrl.u32 %v2336, 7
        %v2338 = vsub.s32 %v2335, %v2337
        %v2339 = vrot.slane %v2332, %v2338
        %v2340 = vcombine.low %v2315, %v2323
        %v2341 = vcombine.high %v2315, %v2323
        %v2343 = vunpack.c.l.s4 1934713408
        %v2344 = vunpack.c.0.s8 %v2343
        %v2345 = vlaneseq
        %v2346 = vshrl.u32 %v2345, 7
        %v2347 = vsub.s32 %v2344, %v2346
        %v2348 = vrot.slane %v2340, %v2347
        %v2350 = vunpack.c.l.s4 1934713408
        %v2351 = vunpack.c.0.s8 %v2350
        %v2352 = vlaneseq
        %v2353 = vshrl.u32 %v2352, 7
        %v2354 = vsub.s32 %v2351, %v2353
        %v2355 = vrot.slane %v2341, %v2354
        %v2356 = vcombine.low %v2331, %v2339
        %v2357 = vcombine.high %v2331, %v2339
        %v2359 = vunpack.c.l.s4 1934713408
        %v2360 = vunpack.c.0.s8 %v2359
        %v2361 = vlaneseq
        %v2362 = vshrl.u32 %v2361, 7
        %v2363 = vsub.s32 %v2360, %v2362
        %v2364 = vrot.slane %v2356, %v2363
        %v2366 = vunpack.c.l.s4 1934713408
        %v2367 = vunpack.c.0.s8 %v2366
        %v2368 = vlaneseq
        %v2369 = vshrl.u32 %v2368, 7
        %v2370 = vsub.s32 %v2367, %v2369
        %v2371 = vrot.slane %v2357, %v2370
        %v2372 = vcombine.low %v2348, %v2364
        %v2373 = vcombine.high %v2348, %v2364
        %v2374 = vcombine.low %v2355, %v2371
        %v2375 = vcombine.low %v621, %v889
        %v2377 = vunpack.c.l.s4 1983009808
        %v2378 = vunpack.c.0.s8 %v2377
        %v2379 = vlaneseq
        %v2380 = vshrl.u32 %v2379, 7
        %v2381 = vsub.s32 %v2378, %v2380
        %v2382 = vrot.slane %v2375, %v2381
        %v2383 = vcombine.low %v755, %v1023
        %v2385 = vunpack.c.l.s4 1983009808
        %v2386 = vunpack.c.0.s8 %v2385
        %v2387 = vlaneseq
        %v2388 = vshrl.u32 %v2387, 7
        %v2389 = vsub.s32 %v2386, %v2388
        %v2390 = vrot.slane %v2383, %v2389
        %v2391 = vcombine.low %v1157, %v1425
        %v2393 = vunpack.c.l.s4 1983009808
        %v2394 = vunpack.c.0.s8 %v2393
        %v2395 = vlaneseq
        %v2396 = vshrl.u32 %v2395, 7
        %v2397 = vsub.s32 %v2394, %v2396
        %v2398 = vrot.slane %v2391, %v2397
        %v2399 = vcombine.low %v1291, %v1559
        %v2401 = vunpack.c.l.s4 1983009808
        %v2402 = vunpack.c.0.s8 %v2401
        %v2403 = vlaneseq
        %v2404 = vshrl.u32 %v2403, 7
        %v2405 = vsub.s32 %v2402, %v2404
        %v2406 = vrot.slane %v2399, %v2405
        %v2407 = vcombine.low %v2382, %v2390
        %v2408 = vcombine.high %v2382, %v2390
        %v2410 = vunpack.c.l.s4 1934713408
        %v2411 = vunpack.c.0.s8 %v2410
        %v2412 = vlaneseq
        %v2413 = vshrl.u32 %v2412, 7
        %v2414 = vsub.s32 %v2411, %v2413
        %v2415 = vrot.slane %v2407, %v2414
        %v2417 = vunpack.c.l.s4 1934713408
        %v2418 = vunpack.c.0.s8 %v2417
        %v2419 = vlaneseq
        %v2420 = vshrl.u32 %v2419, 7
        %v2421 = vsub.s32 %v2418, %v2420
        %v2422 = vrot.slane %v2408, %v2421
        %v2423 = vcombine.low %v2398, %v2406
        %v2424 = vcombine.high %v2398, %v2406
        %v2426 = vunpack.c.l.s4 1934713408
        %v2427 = vunpack.c.0.s8 %v2426
        %v2428 = vlaneseq
        %v2429 = vshrl.u32 %v2428, 7
        %v2430 = vsub.s32 %v2427, %v2429
        %v2431 = vrot.slane %v2423, %v2430
        %v2433 = vunpack.c.l.s4 1934713408
        %v2434 = vunpack.c.0.s8 %v2433
        %v2435 = vlaneseq
        %v2436 = vshrl.u32 %v2435, 7
        %v2437 = vsub.s32 %v2434, %v2436
        %v2438 = vrot.slane %v2424, %v2437
        %v2439 = vcombine.low %v2415, %v2431
        %v2440 = vcombine.high %v2415, %v2431
        %v2441 = vcombine.low %v2422, %v2438
        %v2442 = vcombine.low %v631, %v899
        %v2444 = vunpack.c.l.s4 1983009808
        %v2445 = vunpack.c.0.s8 %v2444
        %v2446 = vlaneseq
        %v2447 = vshrl.u32 %v2446, 7
        %v2448 = vsub.s32 %v2445, %v2447
        %v2449 = vrot.slane %v2442, %v2448
        %v2450 = vcombine.low %v765, %v1033
        %v2452 = vunpack.c.l.s4 1983009808
        %v2453 = vunpack.c.0.s8 %v2452
        %v2454 = vlaneseq
        %v2455 = vshrl.u32 %v2454, 7
        %v2456 = vsub.s32 %v2453, %v2455
        %v2457 = vrot.slane %v2450, %v2456
        %v2458 = vcombine.low %v1167, %v1435
        %v2460 = vunpack.c.l.s4 1983009808
        %v2461 = vunpack.c.0.s8 %v2460
        %v2462 = vlaneseq
        %v2463 = vshrl.u32 %v2462, 7
        %v2464 = vsub.s32 %v2461, %v2463
        %v2465 = vrot.slane %v2458, %v2464
        %v2466 = vcombine.low %v1301, %v1569
        %v2468 = vunpack.c.l.s4 1983009808
        %v2469 = vunpack.c.0.s8 %v2468
        %v2470 = vlaneseq
        %v2471 = vshrl.u32 %v2470, 7
        %v2472 = vsub.s32 %v2469, %v2471
        %v2473 = vrot.slane %v2466, %v2472
        %v2474 = vcombine.low %v2449, %v2457
        %v2475 = vcombine.high %v2449, %v2457
        %v2477 = vunpack.c.l.s4 1934713408
        %v2478 = vunpack.c.0.s8 %v2477
        %v2479 = vlaneseq
        %v2480 = vshrl.u32 %v2479, 7
        %v2481 = vsub.s32 %v2478, %v2480
        %v2482 = vrot.slane %v2474, %v2481
        %v2484 = vunpack.c.l.s4 1934713408
        %v2485 = vunpack.c.0.s8 %v2484
        %v2486 = vlaneseq
        %v2487 = vshrl.u32 %v2486, 7
        %v2488 = vsub.s32 %v2485, %v2487
        %v2489 = vrot.slane %v2475, %v2488
        %v2490 = vcombine.low %v2465, %v2473
        %v2491 = vcombine.high %v2465, %v2473
        %v2493 = vunpack.c.l.s4 1934713408
        %v2494 = vunpack.c.0.s8 %v2493
        %v2495 = vlaneseq
        %v2496 = vshrl.u32 %v2495, 7
        %v2497 = vsub.s32 %v2494, %v2496
        %v2498 = vrot.slane %v2490, %v2497
        %v2500 = vunpack.c.l.s4 1934713408
        %v2501 = vunpack.c.0.s8 %v2500
        %v2502 = vlaneseq
        %v2503 = vshrl.u32 %v2502, 7
        %v2504 = vsub.s32 %v2501, %v2503
        %v2505 = vrot.slane %v2491, %v2504
        %v2506 = vcombine.low %v2482, %v2498
        %v2507 = vcombine.high %v2482, %v2498
        %v2508 = vcombine.low %v2489, %v2505
        %v2509 = vcombine.low %v628, %v896
        %v2511 = vunpack.c.l.s4 1983009808
        %v2512 = vunpack.c.0.s8 %v2511
        %v2513 = vlaneseq
        %v2514 = vshrl.u32 %v2513, 7
        %v2515 = vsub.s32 %v2512, %v2514
        %v2516 = vrot.slane %v2509, %v2515
        %v2517 = vcombine.low %v762, %v1030
        %v2519 = vunpack.c.l.s4 1983009808
        %v2520 = vunpack.c.0.s8 %v2519
        %v2521 = vlaneseq
        %v2522 = vshrl.u32 %v2521, 7
        %v2523 = vsub.s32 %v2520, %v2522
        %v2524 = vrot.slane %v2517, %v2523
        %v2525 = vcombine.low %v1164, %v1432
        %v2527 = vunpack.c.l.s4 1983009808
        %v2528 = vunpack.c.0.s8 %v2527
        %v2529 = vlaneseq
        %v2530 = vshrl.u32 %v2529, 7
        %v2531 = vsub.s32 %v2528, %v2530
        %v2532 = vrot.slane %v2525, %v2531
        %v2533 = vcombine.low %v1298, %v1566
        %v2535 = vunpack.c.l.s4 1983009808
        %v2536 = vunpack.c.0.s8 %v2535
        %v2537 = vlaneseq
        %v2538 = vshrl.u32 %v2537, 7
        %v2539 = vsub.s32 %v2536, %v2538
        %v2540 = vrot.slane %v2533, %v2539
        %v2541 = vcombine.low %v2516, %v2524
        %v2542 = vcombine.high %v2516, %v2524
        %v2544 = vunpack.c.l.s4 1934713408
        %v2545 = vunpack.c.0.s8 %v2544
        %v2546 = vlaneseq
        %v2547 = vshrl.u32 %v2546, 7
        %v2548 = vsub.s32 %v2545, %v2547
        %v2549 = vrot.slane %v2541, %v2548
        %v2551 = vunpack.c.l.s4 1934713408
        %v2552 = vunpack.c.0.s8 %v2551
        %v2553 = vlaneseq
        %v2554 = vshrl.u32 %v2553, 7
        %v2555 = vsub.s32 %v2552, %v2554
        %v2556 = vrot.slane %v2542, %v2555
        %v2557 = vcombine.low %v2532, %v2540
        %v2558 = vcombine.high %v2532, %v2540
        %v2560 = vunpack.c.l.s4 1934713408
        %v2561 = vunpack.c.0.s8 %v2560
        %v2562 = vlaneseq
        %v2563 = vshrl.u32 %v2562, 7
        %v2564 = vsub.s32 %v2561, %v2563
        %v2565 = vrot.slane %v2557, %v2564
        %v2567 = vunpack.c.l.s4 1934713408
        %v2568 = vunpack.c.0.s8 %v2567
        %v2569 = vlaneseq
        %v2570 = vshrl.u32 %v2569, 7
        %v2571 = vsub.s32 %v2568, %v2570
        %v2572 = vrot.slane %v2558, %v2571
        %v2573 = vcombine.low %v2549, %v2565
        %v2574 = vcombine.high %v2549, %v2565
        %v2575 = vcombine.low %v2556, %v2572
        %v2576 = vcombine.low %v632, %v900
        %v2578 = vunpack.c.l.s4 1983009808
        %v2579 = vunpack.c.0.s8 %v2578
        %v2580 = vlaneseq
        %v2581 = vshrl.u32 %v2580, 7
        %v2582 = vsub.s32 %v2579, %v2581
        %v2583 = vrot.slane %v2576, %v2582
        %v2584 = vcombine.low %v766, %v1034
        %v2586 = vunpack.c.l.s4 1983009808
        %v2587 = vunpack.c.0.s8 %v2586
        %v2588 = vlaneseq
        %v2589 = vshrl.u32 %v2588, 7
        %v2590 = vsub.s32 %v2587, %v2589
        %v2591 = vrot.slane %v2584, %v2590
        %v2592 = vcombine.low %v1168, %v1436
        %v2594 = vunpack.c.l.s4 1983009808
        %v2595 = vunpack.c.0.s8 %v2594
        %v2596 = vlaneseq
        %v2597 = vshrl.u32 %v2596, 7
        %v2598 = vsub.s32 %v2595, %v2597
        %v2599 = vrot.slane %v2592, %v2598
        %v2600 = vcombine.low %v1302, %v1570
        %v2602 = vunpack.c.l.s4 1983009808
        %v2603 = vunpack.c.0.s8 %v2602
        %v2604 = vlaneseq
        %v2605 = vshrl.u32 %v2604, 7
        %v2606 = vsub.s32 %v2603, %v2605
        %v2607 = vrot.slane %v2600, %v2606
        %v2608 = vcombine.low %v2583, %v2591
        %v2609 = vcombine.high %v2583, %v2591
        %v2611 = vunpack.c.l.s4 1934713408
        %v2612 = vunpack.c.0.s8 %v2611
        %v2613 = vlaneseq
        %v2614 = vshrl.u32 %v2613, 7
        %v2615 = vsub.s32 %v2612, %v2614
        %v2616 = vrot.slane %v2608, %v2615
        %v2618 = vunpack.c.l.s4 1934713408
        %v2619 = vunpack.c.0.s8 %v2618
        %v2620 = vlaneseq
        %v2621 = vshrl.u32 %v2620, 7
        %v2622 = vsub.s32 %v2619, %v2621
        %v2623 = vrot.slane %v2609, %v2622
        %v2624 = vcombine.low %v2599, %v2607
        %v2625 = vcombine.high %v2599, %v2607
        %v2627 = vunpack.c.l.s4 1934713408
        %v2628 = vunpack.c.0.s8 %v2627
        %v2629 = vlaneseq
        %v2630 = vshrl.u32 %v2629, 7
        %v2631 = vsub.s32 %v2628, %v2630
        %v2632 = vrot.slane %v2624, %v2631
        %v2634 = vunpack.c.l.s4 1934713408
        %v2635 = vunpack.c.0.s8 %v2634
        %v2636 = vlaneseq
        %v2637 = vshrl.u32 %v2636, 7
        %v2638 = vsub.s32 %v2635, %v2637
        %v2639 = vrot.slane %v2625, %v2638
        %v2640 = vcombine.low %v2616, %v2632
        %v2641 = vcombine.high %v2616, %v2632
        %v2642 = vcombine.low %v2623, %v2639
        %v2643 = vcombine.low %v1635, %v1769
        %v2644 = vcombine.high %v1635, %v1769
        %v2646 = vunpack.c.l.s4 1983009808
        %v2647 = vunpack.c.0.s8 %v2646
        %v2648 = vlaneseq
        %v2649 = vshrl.u32 %v2648, 7
        %v2650 = vsub.s32 %v2647, %v2649
        %v2651 = vrot.slane %v2643, %v2650
        %v2653 = vunpack.c.l.s4 1983009808
        %v2654 = vunpack.c.0.s8 %v2653
        %v2655 = vlaneseq
        %v2656 = vshrl.u32 %v2655, 7
        %v2657 = vsub.s32 %v2654, %v2656
        %v2658 = vrot.slane %v2644, %v2657
        %v2659 = vcombine.low %v1702, %v1836
        %v2660 = vcombine.high %v1702, %v1836
        %v2662 = vunpack.c.l.s4 1983009808
        %v2663 = vunpack.c.0.s8 %v2662
        %v2664 = vlaneseq
        %v2665 = vshrl.u32 %v2664, 7
        %v2666 = vsub.s32 %v2663, %v2665
        %v2667 = vrot.slane %v2659, %v2666
        %v2669 = vunpack.c.l.s4 1983009808
        %v2670 = vunpack.c.0.s8 %v2669
        %v2671 = vlaneseq
        %v2672 = vshrl.u32 %v2671, 7
        %v2673 = vsub.s32 %v2670, %v2672
        %v2674 = vrot.slane %v2660, %v2673
        %v2675 = vcombine.low %v1903, %v2037
        %v2676 = vcombine.high %v1903, %v2037
        %v2678 = vunpack.c.l.s4 1983009808
        %v2679 = vunpack.c.0.s8 %v2678
        %v2680 = vlaneseq
        %v2681 = vshrl.u32 %v2680, 7
        %v2682 = vsub.s32 %v2679, %v2681
        %v2683 = vrot.slane %v2675, %v2682
        %v2685 = vunpack.c.l.s4 1983009808
        %v2686 = vunpack.c.0.s8 %v2685
        %v2687 = vlaneseq
        %v2688 = vshrl.u32 %v2687, 7
        %v2689 = vsub.s32 %v2686, %v2688
        %v2690 = vrot.slane %v2676, %v2689
        %v2691 = vcombine.low %v1970, %v2104
        %v2692 = vcombine.high %v1970, %v2104
        %v2694 = vunpack.c.l.s4 1983009808
        %v2695 = vunpack.c.0.s8 %v2694
        %v2696 = vlaneseq
        %v2697 = vshrl.u32 %v2696, 7
        %v2698 = vsub.s32 %v2695, %v2697
        %v2699 = vrot.slane %v2691, %v2698
        %v2701 = vunpack.c.l.s4 1983009808
        %v2702 = vunpack.c.0.s8 %v2701
        %v2703 = vlaneseq
        %v2704 = vshrl.u32 %v2703, 7
        %v2705 = vsub.s32 %v2702, %v2704
        %v2706 = vrot.slane %v2692, %v2705
        %v2707 = vcombine.low %v2651, %v2667
        %v2708 = vcombine.high %v2651, %v2667
        %v2710 = vunpack.c.l.s4 1934713408
        %v2711 = vunpack.c.0.s8 %v2710
        %v2712 = vlaneseq
        %v2713 = vshrl.u32 %v2712, 7
        %v2714 = vsub.s32 %v2711, %v2713
        %v2715 = vrot.slane %v2707, %v2714
        %v2717 = vunpack.c.l.s4 1934713408
        %v2718 = vunpack.c.0.s8 %v2717
        %v2719 = vlaneseq
        %v2720 = vshrl.u32 %v2719, 7
        %v2721 = vsub.s32 %v2718, %v2720
        %v2722 = vrot.slane %v2708, %v2721
        %v2723 = vcombine.low %v2658, %v2674
        %v2724 = vcombine.high %v2658, %v2674
        %v2726 = vunpack.c.l.s4 1934713408
        %v2727 = vunpack.c.0.s8 %v2726
        %v2728 = vlaneseq
        %v2729 = vshrl.u32 %v2728, 7
        %v2730 = vsub.s32 %v2727, %v2729
        %v2731 = vrot.slane %v2723, %v2730
        %v2733 = vunpack.c.l.s4 1934713408
        %v2734 = vunpack.c.0.s8 %v2733
        %v2735 = vlaneseq
        %v2736 = vshrl.u32 %v2735, 7
        %v2737 = vsub.s32 %v2734, %v2736
        %v2738 = vrot.slane %v2724, %v2737
        %v2739 = vcombine.low %v2683, %v2699
        %v2740 = vcombine.high %v2683, %v2699
        %v2742 = vunpack.c.l.s4 1934713408
        %v2743 = vunpack.c.0.s8 %v2742
        %v2744 = vlaneseq
        %v2745 = vshrl.u32 %v2744, 7
        %v2746 = vsub.s32 %v2743, %v2745
        %v2747 = vrot.slane %v2739, %v2746
        %v2749 = vunpack.c.l.s4 1934713408
        %v2750 = vunpack.c.0.s8 %v2749
        %v2751 = vlaneseq
        %v2752 = vshrl.u32 %v2751, 7
        %v2753 = vsub.s32 %v2750, %v2752
        %v2754 = vrot.slane %v2740, %v2753
        %v2755 = vcombine.low %v2690, %v2706
        %v2756 = vcombine.high %v2690, %v2706
        %v2758 = vunpack.c.l.s4 1934713408
        %v2759 = vunpack.c.0.s8 %v2758
        %v2760 = vlaneseq
        %v2761 = vshrl.u32 %v2760, 7
        %v2762 = vsub.s32 %v2759, %v2761
        %v2763 = vrot.slane %v2755, %v2762
        %v2765 = vunpack.c.l.s4 1934713408
        %v2766 = vunpack.c.0.s8 %v2765
        %v2767 = vlaneseq
        %v2768 = vshrl.u32 %v2767, 7
        %v2769 = vsub.s32 %v2766, %v2768
        %v2770 = vrot.slane %v2756, %v2769
        %v2771 = vcombine.low %v2715, %v2747
        %v2772 = vcombine.high %v2715, %v2747
        %v2773 = vcombine.low %v2722, %v2754
        %v2774 = vcombine.high %v2722, %v2754
        %v2775 = vcombine.low %v2731, %v2763
        %v2776 = vcombine.high %v2731, %v2763
        %v2777 = vcombine.low %v2738, %v2770
        %v2778 = vcombine.high %v2738, %v2770
        %v2779 = vcombine.low %v2171, %v2305
        %v2780 = vcombine.high %v2171, %v2305
        %v2782 = vunpack.c.l.s4 1983009808
        %v2783 = vunpack.c.0.s8 %v2782
        %v2784 = vlaneseq
        %v2785 = vshrl.u32 %v2784, 7
        %v2786 = vsub.s32 %v2783, %v2785
        %v2787 = vrot.slane %v2779, %v2786
        %v2789 = vunpack.c.l.s4 1983009808
        %v2790 = vunpack.c.0.s8 %v2789
        %v2791 = vlaneseq
        %v2792 = vshrl.u32 %v2791, 7
        %v2793 = vsub.s32 %v2790, %v2792
        %v2794 = vrot.slane %v2780, %v2793
        %v2795 = vcombine.low %v2238, %v2372
        %v2796 = vcombine.high %v2238, %v2372
        %v2798 = vunpack.c.l.s4 1983009808
        %v2799 = vunpack.c.0.s8 %v2798
        %v2800 = vlaneseq
        %v2801 = vshrl.u32 %v2800, 7
        %v2802 = vsub.s32 %v2799, %v2801
        %v2803 = vrot.slane %v2795, %v2802
        %v2805 = vunpack.c.l.s4 1983009808
        %v2806 = vunpack.c.0.s8 %v2805
        %v2807 = vlaneseq
        %v2808 = vshrl.u32 %v2807, 7
        %v2809 = vsub.s32 %v2806, %v2808
        %v2810 = vrot.slane %v2796, %v2809
        %v2811 = vcombine.low %v2439, %v2573
        %v2812 = vcombine.high %v2439, %v2573
        %v2814 = vunpack.c.l.s4 1983009808
        %v2815 = vunpack.c.0.s8 %v2814
        %v2816 = vlaneseq
        %v2817 = vshrl.u32 %v2816, 7
        %v2818 = vsub.s32 %v2815, %v2817
        %v2819 = vrot.slane %v2811, %v2818
        %v2821 = vunpack.c.l.s4 1983009808
        %v2822 = vunpack.c.0.s8 %v2821
        %v2823 = vlaneseq
        %v2824 = vshrl.u32 %v2823, 7
        %v2825 = vsub.s32 %v2822, %v2824
        %v2826 = vrot.slane %v2812, %v2825
        %v2827 = vcombine.low %v2506, %v2640
        %v2828 = vcombine.high %v2506, %v2640
        %v2830 = vunpack.c.l.s4 1983009808
        %v2831 = vunpack.c.0.s8 %v2830
        %v2832 = vlaneseq
        %v2833 = vshrl.u32 %v2832, 7
        %v2834 = vsub.s32 %v2831, %v2833
        %v2835 = vrot.slane %v2827, %v2834
        %v2837 = vunpack.c.l.s4 1983009808
        %v2838 = vunpack.c.0.s8 %v2837
        %v2839 = vlaneseq
        %v2840 = vshrl.u32 %v2839, 7
        %v2841 = vsub.s32 %v2838, %v2840
        %v2842 = vrot.slane %v2828, %v2841
        %v2843 = vcombine.low %v2787, %v2803
        %v2844 = vcombine.high %v2787, %v2803
        %v2846 = vunpack.c.l.s4 1934713408
        %v2847 = vunpack.c.0.s8 %v2846
        %v2848 = vlaneseq
        %v2849 = vshrl.u32 %v2848, 7
        %v2850 = vsub.s32 %v2847, %v2849
        %v2851 = vrot.slane %v2843, %v2850
        %v2853 = vunpack.c.l.s4 1934713408
        %v2854 = vunpack.c.0.s8 %v2853
        %v2855 = vlaneseq
        %v2856 = vshrl.u32 %v2855, 7
        %v2857 = vsub.s32 %v2854, %v2856
        %v2858 = vrot.slane %v2844, %v2857
        %v2859 = vcombine.low %v2794, %v2810
        %v2860 = vcombine.high %v2794, %v2810
        %v2862 = vunpack.c.l.s4 1934713408
        %v2863 = vunpack.c.0.s8 %v2862
        %v2864 = vlaneseq
        %v2865 = vshrl.u32 %v2864, 7
        %v2866 = vsub.s32 %v2863, %v2865
        %v2867 = vrot.slane %v2859, %v2866
        %v2869 = vunpack.c.l.s4 1934713408
        %v2870 = vunpack.c.0.s8 %v2869
        %v2871 = vlaneseq
        %v2872 = vshrl.u32 %v2871, 7
        %v2873 = vsub.s32 %v2870, %v2872
        %v2874 = vrot.slane %v2860, %v2873
        %v2875 = vcombine.low %v2819, %v2835
        %v2876 = vcombine.high %v2819, %v2835
        %v2878 = vunpack.c.l.s4 1934713408
        %v2879 = vunpack.c.0.s8 %v2878
        %v2880 = vlaneseq
        %v2881 = vshrl.u32 %v2880, 7
        %v2882 = vsub.s32 %v2879, %v2881
        %v2883 = vrot.slane %v2875, %v2882
        %v2885 = vunpack.c.l.s4 1934713408
        %v2886 = vunpack.c.0.s8 %v2885
        %v2887 = vlaneseq
        %v2888 = vshrl.u32 %v2887, 7
        %v2889 = vsub.s32 %v2886, %v2888
        %v2890 = vrot.slane %v2876, %v2889
        %v2891 = vcombine.low %v2826, %v2842
        %v2892 = vcombine.high %v2826, %v2842
        %v2894 = vunpack.c.l.s4 1934713408
        %v2895 = vunpack.c.0.s8 %v2894
        %v2896 = vlaneseq
        %v2897 = vshrl.u32 %v2896, 7
        %v2898 = vsub.s32 %v2895, %v2897
        %v2899 = vrot.slane %v2891, %v2898
        %v2901 = vunpack.c.l.s4 1934713408
        %v2902 = vunpack.c.0.s8 %v2901
        %v2903 = vlaneseq
        %v2904 = vshrl.u32 %v2903, 7
        %v2905 = vsub.s32 %v2902, %v2904
        %v2906 = vrot.slane %v2892, %v2905
        %v2907 = vcombine.low %v2851, %v2883
        %v2908 = vcombine.high %v2851, %v2883
        %v2909 = vcombine.low %v2858, %v2890
        %v2910 = vcombine.high %v2858, %v2890
        %v2911 = vcombine.low %v2867, %v2899
        %v2912 = vcombine.high %v2867, %v2899
        %v2913 = vcombine.low %v2874, %v2906
        %v2914 = vcombine.high %v2874, %v2906
        %v2915 = vcombine.low %v1636, %v1770
        %v2916 = vcombine.high %v1636, %v1770
        %v2918 = vunpack.c.l.s4 1983009808
        %v2919 = vunpack.c.0.s8 %v2918
        %v2920 = vlaneseq
        %v2921 = vshrl.u32 %v2920, 7
        %v2922 = vsub.s32 %v2919, %v2921
        %v2923 = vrot.slane %v2915, %v2922
        %v2925 = vunpack.c.l.s4 1983009808
        %v2926 = vunpack.c.0.s8 %v2925
        %v2927 = vlaneseq
        %v2928 = vshrl.u32 %v2927, 7
        %v2929 = vsub.s32 %v2926, %v2928
        %v2930 = vrot.slane %v2916, %v2929
        %v2931 = vcombine.low %v1703, %v1837
        %v2932 = vcombine.high %v1703, %v1837
        %v2934 = vunpack.c.l.s4 1983009808
        %v2935 = vunpack.c.0.s8 %v2934
        %v2936 = vlaneseq
        %v2937 = vshrl.u32 %v2936, 7
        %v2938 = vsub.s32 %v2935, %v2937
        %v2939 = vrot.slane %v2931, %v2938
        %v2941 = vunpack.c.l.s4 1983009808
        %v2942 = vunpack.c.0.s8 %v2941
        %v2943 = vlaneseq
        %v2944 = vshrl.u32 %v2943, 7
        %v2945 = vsub.s32 %v2942, %v2944
        %v2946 = vrot.slane %v2932, %v2945
        %v2947 = vcombine.low %v1904, %v2038
        %v2948 = vcombine.high %v1904, %v2038
        %v2950 = vunpack.c.l.s4 1983009808
        %v2951 = vunpack.c.0.s8 %v2950
        %v2952 = vlaneseq
        %v2953 = vshrl.u32 %v2952, 7
        %v2954 = vsub.s32 %v2951, %v2953
        %v2955 = vrot.slane %v2947, %v2954
        %v2957 = vunpack.c.l.s4 1983009808
        %v2958 = vunpack.c.0.s8 %v2957
        %v2959 = vlaneseq
        %v2960 = vshrl.u32 %v2959, 7
        %v2961 = vsub.s32 %v2958, %v2960
        %v2962 = vrot.slane %v2948, %v2961
        %v2963 = vcombine.low %v1971, %v2105
        %v2964 = vcombine.high %v1971, %v2105
        %v2966 = vunpack.c.l.s4 1983009808
        %v2967 = vunpack.c.0.s8 %v2966
        %v2968 = vlaneseq
        %v2969 = vshrl.u32 %v2968, 7
        %v2970 = vsub.s32 %v2967, %v2969
        %v2971 = vrot.slane %v2963, %v2970
        %v2973 = vunpack.c.l.s4 1983009808
        %v2974 = vunpack.c.0.s8 %v2973
        %v2975 = vlaneseq
        %v2976 = vshrl.u32 %v2975, 7
        %v2977 = vsub.s32 %v2974, %v2976
        %v2978 = vrot.slane %v2964, %v2977
        %v2979 = vcombine.low %v2923, %v2939
        %v2980 = vcombine.high %v2923, %v2939
        %v2982 = vunpack.c.l.s4 1934713408
        %v2983 = vunpack.c.0.s8 %v2982
        %v2984 = vlaneseq
        %v2985 = vshrl.u32 %v2984, 7
        %v2986 = vsub.s32 %v2983, %v2985
        %v2987 = vrot.slane %v2979, %v2986
        %v2989 = vunpack.c.l.s4 1934713408
        %v2990 = vunpack.c.0.s8 %v2989
        %v2991 = vlaneseq
        %v2992 = vshrl.u32 %v2991, 7
        %v2993 = vsub.s32 %v2990, %v2992
        %v2994 = vrot.slane %v2980, %v2993
        %v2995 = vcombine.low %v2930, %v2946
        %v2996 = vcombine.high %v2930, %v2946
        %v2998 = vunpack.c.l.s4 1934713408
        %v2999 = vunpack.c.0.s8 %v2998
        %v3000 = vlaneseq
        %v3001 = vshrl.u32 %v3000, 7
        %v3002 = vsub.s32 %v2999, %v3001
        %v3003 = vrot.slane %v2995, %v3002
        %v3005 = vunpack.c.l.s4 1934713408
        %v3006 = vunpack.c.0.s8 %v3005
        %v3007 = vlaneseq
        %v3008 = vshrl.u32 %v3007, 7
        %v3009 = vsub.s32 %v3006, %v3008
        %v3010 = vrot.slane %v2996, %v3009
        %v3011 = vcombine.low %v2955, %v2971
        %v3012 = vcombine.high %v2955, %v2971
        %v3014 = vunpack.c.l.s4 1934713408
        %v3015 = vunpack.c.0.s8 %v3014
        %v3016 = vlaneseq
        %v3017 = vshrl.u32 %v3016, 7
        %v3018 = vsub.s32 %v3015, %v3017
        %v3019 = vrot.slane %v3011, %v3018
        %v3021 = vunpack.c.l.s4 1934713408
        %v3022 = vunpack.c.0.s8 %v3021
        %v3023 = vlaneseq
        %v3024 = vshrl.u32 %v3023, 7
        %v3025 = vsub.s32 %v3022, %v3024
        %v3026 = vrot.slane %v3012, %v3025
        %v3027 = vcombine.low %v2962, %v2978
        %v3028 = vcombine.high %v2962, %v2978
        %v3030 = vunpack.c.l.s4 1934713408
        %v3031 = vunpack.c.0.s8 %v3030
        %v3032 = vlaneseq
        %v3033 = vshrl.u32 %v3032, 7
        %v3034 = vsub.s32 %v3031, %v3033
        %v3035 = vrot.slane %v3027, %v3034
        %v3037 = vunpack.c.l.s4 1934713408
        %v3038 = vunpack.c.0.s8 %v3037
        %v3039 = vlaneseq
        %v3040 = vshrl.u32 %v3039, 7
        %v3041 = vsub.s32 %v3038, %v3040
        %v3042 = vrot.slane %v3028, %v3041
        %v3043 = vcombine.low %v2987, %v3019
        %v3044 = vcombine.high %v2987, %v3019
        %v3045 = vcombine.low %v2994, %v3026
        %v3046 = vcombine.high %v2994, %v3026
        %v3047 = vcombine.low %v3003, %v3035
        %v3048 = vcombine.high %v3003, %v3035
        %v3049 = vcombine.low %v3010, %v3042
        %v3050 = vcombine.high %v3010, %v3042
        %v3051 = vcombine.low %v2172, %v2306
        %v3052 = vcombine.high %v2172, %v2306
        %v3054 = vunpack.c.l.s4 1983009808
        %v3055 = vunpack.c.0.s8 %v3054
        %v3056 = vlaneseq
        %v3057 = vshrl.u32 %v3056, 7
        %v3058 = vsub.s32 %v3055, %v3057
        %v3059 = vrot.slane %v3051, %v3058
        %v3061 = vunpack.c.l.s4 1983009808
        %v3062 = vunpack.c.0.s8 %v3061
        %v3063 = vlaneseq
        %v3064 = vshrl.u32 %v3063, 7
        %v3065 = vsub.s32 %v3062, %v3064
        %v3066 = vrot.slane %v3052, %v3065
        %v3067 = vcombine.low %v2239, %v2373
        %v3068 = vcombine.high %v2239, %v2373
        %v3070 = vunpack.c.l.s4 1983009808
        %v3071 = vunpack.c.0.s8 %v3070
        %v3072 = vlaneseq
        %v3073 = vshrl.u32 %v3072, 7
        %v3074 = vsub.s32 %v3071, %v3073
        %v3075 = vrot.slane %v3067, %v3074
        %v3077 = vunpack.c.l.s4 1983009808
        %v3078 = vunpack.c.0.s8 %v3077
        %v3079 = vlaneseq
        %v3080 = vshrl.u32 %v3079, 7
        %v3081 = vsub.s32 %v3078, %v3080
        %v3082 = vrot.slane %v3068, %v3081
        %v3083 = vcombine.low %v2440, %v2574
        %v3084 = vcombine.high %v2440, %v2574
        %v3086 = vunpack.c.l.s4 1983009808
        %v3087 = vunpack.c.0.s8 %v3086
        %v3088 = vlaneseq
        %v3089 = vshrl.u32 %v3088, 7
        %v3090 = vsub.s32 %v3087, %v3089
        %v3091 = vrot.slane %v3083, %v3090
        %v3093 = vunpack.c.l.s4 1983009808
        %v3094 = vunpack.c.0.s8 %v3093
        %v3095 = vlaneseq
        %v3096 = vshrl.u32 %v3095, 7
        %v3097 = vsub.s32 %v3094, %v3096
        %v3098 = vrot.slane %v3084, %v3097
        %v3099 = vcombine.low %v2507, %v2641
        %v3100 = vcombine.high %v2507, %v2641
        %v3102 = vunpack.c.l.s4 1983009808
        %v3103 = vunpack.c.0.s8 %v3102
        %v3104 = vlaneseq
        %v3105 = vshrl.u32 %v3104, 7
        %v3106 = vsub.s32 %v3103, %v3105
        %v3107 = vrot.slane %v3099, %v3106
        %v3109 = vunpack.c.l.s4 1983009808
        %v3110 = vunpack.c.0.s8 %v3109
        %v3111 = vlaneseq
        %v3112 = vshrl.u32 %v3111, 7
        %v3113 = vsub.s32 %v3110, %v3112
        %v3114 = vrot.slane %v3100, %v3113
        %v3115 = vcombine.low %v3059, %v3075
        %v3116 = vcombine.high %v3059, %v3075
        %v3118 = vunpack.c.l.s4 1934713408
        %v3119 = vunpack.c.0.s8 %v3118
        %v3120 = vlaneseq
        %v3121 = vshrl.u32 %v3120, 7
        %v3122 = vsub.s32 %v3119, %v3121
        %v3123 = vrot.slane %v3115, %v3122
        %v3125 = vunpack.c.l.s4 1934713408
        %v3126 = vunpack.c.0.s8 %v3125
        %v3127 = vlaneseq
        %v3128 = vshrl.u32 %v3127, 7
        %v3129 = vsub.s32 %v3126, %v3128
        %v3130 = vrot.slane %v3116, %v3129
        %v3131 = vcombine.low %v3066, %v3082
        %v3132 = vcombine.high %v3066, %v3082
        %v3134 = vunpack.c.l.s4 1934713408
        %v3135 = vunpack.c.0.s8 %v3134
        %v3136 = vlaneseq
        %v3137 = vshrl.u32 %v3136, 7
        %v3138 = vsub.s32 %v3135, %v3137
        %v3139 = vrot.slane %v3131, %v3138
        %v3141 = vunpack.c.l.s4 1934713408
        %v3142 = vunpack.c.0.s8 %v3141
        %v3143 = vlaneseq
        %v3144 = vshrl.u32 %v3143, 7
        %v3145 = vsub.s32 %v3142, %v3144
        %v3146 = vrot.slane %v3132, %v3145
        %v3147 = vcombine.low %v3091, %v3107
        %v3148 = vcombine.high %v3091, %v3107
        %v3150 = vunpack.c.l.s4 1934713408
        %v3151 = vunpack.c.0.s8 %v3150
        %v3152 = vlaneseq
        %v3153 = vshrl.u32 %v3152, 7
        %v3154 = vsub.s32 %v3151, %v3153
        %v3155 = vrot.slane %v3147, %v3154
        %v3157 = vunpack.c.l.s4 1934713408
        %v3158 = vunpack.c.0.s8 %v3157
        %v3159 = vlaneseq
        %v3160 = vshrl.u32 %v3159, 7
        %v3161 = vsub.s32 %v3158, %v3160
        %v3162 = vrot.slane %v3148, %v3161
        %v3163 = vcombine.low %v3098, %v3114
        %v3164 = vcombine.high %v3098, %v3114
        %v3166 = vunpack.c.l.s4 1934713408
        %v3167 = vunpack.c.0.s8 %v3166
        %v3168 = vlaneseq
        %v3169 = vshrl.u32 %v3168, 7
        %v3170 = vsub.s32 %v3167, %v3169
        %v3171 = vrot.slane %v3163, %v3170
        %v3173 = vunpack.c.l.s4 1934713408
        %v3174 = vunpack.c.0.s8 %v3173
        %v3175 = vlaneseq
        %v3176 = vshrl.u32 %v3175, 7
        %v3177 = vsub.s32 %v3174, %v3176
        %v3178 = vrot.slane %v3164, %v3177
        %v3179 = vcombine.low %v3123, %v3155
        %v3180 = vcombine.high %v3123, %v3155
        %v3181 = vcombine.low %v3130, %v3162
        %v3182 = vcombine.high %v3130, %v3162
        %v3183 = vcombine.low %v3139, %v3171
        %v3184 = vcombine.high %v3139, %v3171
        %v3185 = vcombine.low %v3146, %v3178
        %v3186 = vcombine.high %v3146, %v3178
        %v3187 = vcombine.low %v1637, %v1771
        %v3188 = vcombine.high %v1637, %v1771
        %v3190 = vunpack.c.l.s4 1983009808
        %v3191 = vunpack.c.0.s8 %v3190
        %v3192 = vlaneseq
        %v3193 = vshrl.u32 %v3192, 7
        %v3194 = vsub.s32 %v3191, %v3193
        %v3195 = vrot.slane %v3187, %v3194
        %v3197 = vunpack.c.l.s4 1983009808
        %v3198 = vunpack.c.0.s8 %v3197
        %v3199 = vlaneseq
        %v3200 = vshrl.u32 %v3199, 7
        %v3201 = vsub.s32 %v3198, %v3200
        %v3202 = vrot.slane %v3188, %v3201
        %v3203 = vcombine.low %v1704, %v1838
        %v3204 = vcombine.high %v1704, %v1838
        %v3206 = vunpack.c.l.s4 1983009808
        %v3207 = vunpack.c.0.s8 %v3206
        %v3208 = vlaneseq
        %v3209 = vshrl.u32 %v3208, 7
        %v3210 = vsub.s32 %v3207, %v3209
        %v3211 = vrot.slane %v3203, %v3210
        %v3213 = vunpack.c.l.s4 1983009808
        %v3214 = vunpack.c.0.s8 %v3213
        %v3215 = vlaneseq
        %v3216 = vshrl.u32 %v3215, 7
        %v3217 = vsub.s32 %v3214, %v3216
        %v3218 = vrot.slane %v3204, %v3217
        %v3219 = vcombine.low %v1905, %v2039
        %v3220 = vcombine.high %v1905, %v2039
        %v3222 = vunpack.c.l.s4 1983009808
        %v3223 = vunpack.c.0.s8 %v3222
        %v3224 = vlaneseq
        %v3225 = vshrl.u32 %v3224, 7
        %v3226 = vsub.s32 %v3223, %v3225
        %v3227 = vrot.slane %v3219, %v3226
        %v3229 = vunpack.c.l.s4 1983009808
        %v3230 = vunpack.c.0.s8 %v3229
        %v3231 = vlaneseq
        %v3232 = vshrl.u32 %v3231, 7
        %v3233 = vsub.s32 %v3230, %v3232
        %v3234 = vrot.slane %v3220, %v3233
        %v3235 = vcombine.low %v1972, %v2106
        %v3236 = vcombine.high %v1972, %v2106
        %v3238 = vunpack.c.l.s4 1983009808
        %v3239 = vunpack.c.0.s8 %v3238
        %v3240 = vlaneseq
        %v3241 = vshrl.u32 %v3240, 7
        %v3242 = vsub.s32 %v3239, %v3241
        %v3243 = vrot.slane %v3235, %v3242
        %v3245 = vunpack.c.l.s4 1983009808
        %v3246 = vunpack.c.0.s8 %v3245
        %v3247 = vlaneseq
        %v3248 = vshrl.u32 %v3247, 7
        %v3249 = vsub.s32 %v3246, %v3248
        %v3250 = vrot.slane %v3236, %v3249
        %v3251 = vcombine.low %v3195, %v3211
        %v3252 = vcombine.high %v3195, %v3211
        %v3254 = vunpack.c.l.s4 1934713408
        %v3255 = vunpack.c.0.s8 %v3254
        %v3256 = vlaneseq
        %v3257 = vshrl.u32 %v3256, 7
        %v3258 = vsub.s32 %v3255, %v3257
        %v3259 = vrot.slane %v3251, %v3258
        %v3261 = vunpack.c.l.s4 1934713408
        %v3262 = vunpack.c.0.s8 %v3261
        %v3263 = vlaneseq
        %v3264 = vshrl.u32 %v3263, 7
        %v3265 = vsub.s32 %v3262, %v3264
        %v3266 = vrot.slane %v3252, %v3265
        %v3267 = vcombine.low %v3202, %v3218
        %v3268 = vcombine.high %v3202, %v3218
        %v3270 = vunpack.c.l.s4 1934713408
        %v3271 = vunpack.c.0.s8 %v3270
        %v3272 = vlaneseq
        %v3273 = vshrl.u32 %v3272, 7
        %v3274 = vsub.s32 %v3271, %v3273
        %v3275 = vrot.slane %v3267, %v3274
        %v3277 = vunpack.c.l.s4 1934713408
        %v3278 = vunpack.c.0.s8 %v3277
        %v3279 = vlaneseq
        %v3280 = vshrl.u32 %v3279, 7
        %v3281 = vsub.s32 %v3278, %v3280
        %v3282 = vrot.slane %v3268, %v3281
        %v3283 = vcombine.low %v3227, %v3243
        %v3284 = vcombine.high %v3227, %v3243
        %v3286 = vunpack.c.l.s4 1934713408
        %v3287 = vunpack.c.0.s8 %v3286
        %v3288 = vlaneseq
        %v3289 = vshrl.u32 %v3288, 7
        %v3290 = vsub.s32 %v3287, %v3289
        %v3291 = vrot.slane %v3283, %v3290
        %v3293 = vunpack.c.l.s4 1934713408
        %v3294 = vunpack.c.0.s8 %v3293
        %v3295 = vlaneseq
        %v3296 = vshrl.u32 %v3295, 7
        %v3297 = vsub.s32 %v3294, %v3296
        %v3298 = vrot.slane %v3284, %v3297
        %v3299 = vcombine.low %v3234, %v3250
        %v3300 = vcombine.high %v3234, %v3250
        %v3302 = vunpack.c.l.s4 1934713408
        %v3303 = vunpack.c.0.s8 %v3302
        %v3304 = vlaneseq
        %v3305 = vshrl.u32 %v3304, 7
        %v3306 = vsub.s32 %v3303, %v3305
        %v3307 = vrot.slane %v3299, %v3306
        %v3309 = vunpack.c.l.s4 1934713408
        %v3310 = vunpack.c.0.s8 %v3309
        %v3311 = vlaneseq
        %v3312 = vshrl.u32 %v3311, 7
        %v3313 = vsub.s32 %v3310, %v3312
        %v3314 = vrot.slane %v3300, %v3313
        %v3315 = vcombine.low %v3259, %v3291
        %v3316 = vcombine.high %v3259, %v3291
        %v3317 = vcombine.low %v3266, %v3298
        %v3318 = vcombine.high %v3266, %v3298
        %v3319 = vcombine.low %v3275, %v3307
        %v3320 = vcombine.high %v3275, %v3307
        %v3321 = vcombine.low %v3282, %v3314
        %v3322 = vcombine.high %v3282, %v3314
        %v3323 = vcombine.low %v2173, %v2307
        %v3324 = vcombine.high %v2173, %v2307
        %v3326 = vunpack.c.l.s4 1983009808
        %v3327 = vunpack.c.0.s8 %v3326
        %v3328 = vlaneseq
        %v3329 = vshrl.u32 %v3328, 7
        %v3330 = vsub.s32 %v3327, %v3329
        %v3331 = vrot.slane %v3323, %v3330
        %v3333 = vunpack.c.l.s4 1983009808
        %v3334 = vunpack.c.0.s8 %v3333
        %v3335 = vlaneseq
        %v3336 = vshrl.u32 %v3335, 7
        %v3337 = vsub.s32 %v3334, %v3336
        %v3338 = vrot.slane %v3324, %v3337
        %v3339 = vcombine.low %v2240, %v2374
        %v3340 = vcombine.high %v2240, %v2374
        %v3342 = vunpack.c.l.s4 1983009808
        %v3343 = vunpack.c.0.s8 %v3342
        %v3344 = vlaneseq
        %v3345 = vshrl.u32 %v3344, 7
        %v3346 = vsub.s32 %v3343, %v3345
        %v3347 = vrot.slane %v3339, %v3346
        %v3349 = vunpack.c.l.s4 1983009808
        %v3350 = vunpack.c.0.s8 %v3349
        %v3351 = vlaneseq
        %v3352 = vshrl.u32 %v3351, 7
        %v3353 = vsub.s32 %v3350, %v3352
        %v3354 = vrot.slane %v3340, %v3353
        %v3355 = vcombine.low %v2441, %v2575
        %v3356 = vcombine.high %v2441, %v2575
        %v3358 = vunpack.c.l.s4 1983009808
        %v3359 = vunpack.c.0.s8 %v3358
        %v3360 = vlaneseq
        %v3361 = vshrl.u32 %v3360, 7
        %v3362 = vsub.s32 %v3359, %v3361
        %v3363 = vrot.slane %v3355, %v3362
        %v3365 = vunpack.c.l.s4 1983009808
        %v3366 = vunpack.c.0.s8 %v3365
        %v3367 = vlaneseq
        %v3368 = vshrl.u32 %v3367, 7
        %v3369 = vsub.s32 %v3366, %v3368
        %v3370 = vrot.slane %v3356, %v3369
        %v3371 = vcombine.low %v2508, %v2642
        %v3372 = vcombine.high %v2508, %v2642
        %v3374 = vunpack.c.l.s4 1983009808
        %v3375 = vunpack.c.0.s8 %v3374
        %v3376 = vlaneseq
        %v3377 = vshrl.u32 %v3376, 7
        %v3378 = vsub.s32 %v3375, %v3377
        %v3379 = vrot.slane %v3371, %v3378
        %v3381 = vunpack.c.l.s4 1983009808
        %v3382 = vunpack.c.0.s8 %v3381
        %v3383 = vlaneseq
        %v3384 = vshrl.u32 %v3383, 7
        %v3385 = vsub.s32 %v3382, %v3384
        %v3386 = vrot.slane %v3372, %v3385
        %v3387 = vcombine.low %v3331, %v3347
        %v3388 = vcombine.high %v3331, %v3347
        %v3390 = vunpack.c.l.s4 1934713408
        %v3391 = vunpack.c.0.s8 %v3390
        %v3392 = vlaneseq
        %v3393 = vshrl.u32 %v3392, 7
        %v3394 = vsub.s32 %v3391, %v3393
        %v3395 = vrot.slane %v3387, %v3394
        %v3397 = vunpack.c.l.s4 1934713408
        %v3398 = vunpack.c.0.s8 %v3397
        %v3399 = vlaneseq
        %v3400 = vshrl.u32 %v3399, 7
        %v3401 = vsub.s32 %v3398, %v3400
        %v3402 = vrot.slane %v3388, %v3401
        %v3403 = vcombine.low %v3338, %v3354
        %v3404 = vcombine.high %v3338, %v3354
        %v3406 = vunpack.c.l.s4 1934713408
        %v3407 = vunpack.c.0.s8 %v3406
        %v3408 = vlaneseq
        %v3409 = vshrl.u32 %v3408, 7
        %v3410 = vsub.s32 %v3407, %v3409
        %v3411 = vrot.slane %v3403, %v3410
        %v3413 = vunpack.c.l.s4 1934713408
        %v3414 = vunpack.c.0.s8 %v3413
        %v3415 = vlaneseq
        %v3416 = vshrl.u32 %v3415, 7
        %v3417 = vsub.s32 %v3414, %v3416
        %v3418 = vrot.slane %v3404, %v3417
        %v3419 = vcombine.low %v3363, %v3379
        %v3420 = vcombine.high %v3363, %v3379
        %v3422 = vunpack.c.l.s4 1934713408
        %v3423 = vunpack.c.0.s8 %v3422
        %v3424 = vlaneseq
        %v3425 = vshrl.u32 %v3424, 7
        %v3426 = vsub.s32 %v3423, %v3425
        %v3427 = vrot.slane %v3419, %v3426
        %v3429 = vunpack.c.l.s4 1934713408
        %v3430 = vunpack.c.0.s8 %v3429
        %v3431 = vlaneseq
        %v3432 = vshrl.u32 %v3431, 7
        %v3433 = vsub.s32 %v3430, %v3432
        %v3434 = vrot.slane %v3420, %v3433
        %v3435 = vcombine.low %v3370, %v3386
        %v3436 = vcombine.high %v3370, %v3386
        %v3438 = vunpack.c.l.s4 1934713408
        %v3439 = vunpack.c.0.s8 %v3438
        %v3440 = vlaneseq
        %v3441 = vshrl.u32 %v3440, 7
        %v3442 = vsub.s32 %v3439, %v3441
        %v3443 = vrot.slane %v3435, %v3442
        %v3445 = vunpack.c.l.s4 1934713408
        %v3446 = vunpack.c.0.s8 %v3445
        %v3447 = vlaneseq
        %v3448 = vshrl.u32 %v3447, 7
        %v3449 = vsub.s32 %v3446, %v3448
        %v3450 = vrot.slane %v3436, %v3449
        %v3451 = vcombine.low %v3395, %v3427
        %v3452 = vcombine.high %v3395, %v3427
        %v3453 = vcombine.low %v3402, %v3434
        %v3454 = vcombine.high %v3402, %v3434
        %v3455 = vcombine.low %v3411, %v3443
        %v3456 = vcombine.high %v3411, %v3443
        %v3457 = vcombine.low %v3418, %v3450
        %v3458 = vcombine.high %v3418, %v3450
        %3465 = vrot.lane.b32.xlu0 %v2772, 32
        %v3466 = vpop.permute.xlu0 %3465
        %3467 = vrot.lane.b32.xlu0 %v2908, 32
        %v3468 = vpop.permute.xlu0 %3467
        %3469 = vrot.lane.b32.xlu0 %v3044, 32
        %v3470 = vpop.permute.xlu0 %3469
        %3471 = vrot.lane.b32.xlu0 %v3180, 32
        %v3472 = vpop.permute.xlu0 %3471
        %3473 = vrot.lane.b32.xlu0 %v3316, 32
        %v3474 = vpop.permute.xlu0 %3473
        %3475 = vrot.lane.b32.xlu0 %v3452, 32
        %v3476 = vpop.permute.xlu0 %3475
        %3489 = vrot.lane.b32.xlu0 %v2773, 64
        %v3490 = vpop.permute.xlu0 %3489
        %3491 = vrot.lane.b32.xlu0 %v2909, 64
        %v3492 = vpop.permute.xlu0 %3491
        %3493 = vrot.lane.b32.xlu0 %v3045, 64
        %v3494 = vpop.permute.xlu0 %3493
        %3495 = vrot.lane.b32.xlu0 %v3181, 64
        %v3496 = vpop.permute.xlu0 %3495
        %3497 = vrot.lane.b32.xlu0 %v3317, 64
        %v3498 = vpop.permute.xlu0 %3497
        %3499 = vrot.lane.b32.xlu0 %v3453, 64
        %v3500 = vpop.permute.xlu0 %3499
        %3513 = vrot.lane.b32.xlu0 %v2774, 96
        %v3514 = vpop.permute.xlu0 %3513
        %3515 = vrot.lane.b32.xlu0 %v2910, 96
        %v3516 = vpop.permute.xlu0 %3515
        %3517 = vrot.lane.b32.xlu0 %v3046, 96
        %v3518 = vpop.permute.xlu0 %3517
        %3519 = vrot.lane.b32.xlu0 %v3182, 96
        %v3520 = vpop.permute.xlu0 %3519
        %3521 = vrot.lane.b32.xlu0 %v3318, 96
        %v3522 = vpop.permute.xlu0 %3521
        %3523 = vrot.lane.b32.xlu0 %v3454, 96
        %v3524 = vpop.permute.xlu0 %3523
        %3537 = vrot.lane.b32.xlu0 %v2776, 32
        %v3538 = vpop.permute.xlu0 %3537
        %3539 = vrot.lane.b32.xlu0 %v2912, 32
        %v3540 = vpop.permute.xlu0 %3539
        %3541 = vrot.lane.b32.xlu0 %v3048, 32
        %v3542 = vpop.permute.xlu0 %3541
        %3543 = vrot.lane.b32.xlu0 %v3184, 32
        %v3544 = vpop.permute.xlu0 %3543
        %3545 = vrot.lane.b32.xlu0 %v3320, 32
        %v3546 = vpop.permute.xlu0 %3545
        %3547 = vrot.lane.b32.xlu0 %v3456, 32
        %v3548 = vpop.permute.xlu0 %3547
        %3561 = vrot.lane.b32.xlu0 %v2777, 64
        %v3562 = vpop.permute.xlu0 %3561
        %3563 = vrot.lane.b32.xlu0 %v2913, 64
        %v3564 = vpop.permute.xlu0 %3563
        %3565 = vrot.lane.b32.xlu0 %v3049, 64
        %v3566 = vpop.permute.xlu0 %3565
        %3567 = vrot.lane.b32.xlu0 %v3185, 64
        %v3568 = vpop.permute.xlu0 %3567
        %3569 = vrot.lane.b32.xlu0 %v3321, 64
        %v3570 = vpop.permute.xlu0 %3569
        %3571 = vrot.lane.b32.xlu0 %v3457, 64
        %v3572 = vpop.permute.xlu0 %3571
        %3585 = vrot.lane.b32.xlu0 %v2778, 96
        %v3586 = vpop.permute.xlu0 %3585
        %3587 = vrot.lane.b32.xlu0 %v2914, 96
        %v3588 = vpop.permute.xlu0 %3587
        %3589 = vrot.lane.b32.xlu0 %v3050, 96
        %v3590 = vpop.permute.xlu0 %3589
        %3591 = vrot.lane.b32.xlu0 %v3186, 96
        %v3592 = vpop.permute.xlu0 %3591
        %3593 = vrot.lane.b32.xlu0 %v3322, 96
        %v3594 = vpop.permute.xlu0 %3593
        %3595 = vrot.lane.b32.xlu0 %v3458, 96
        %v3596 = vpop.permute.xlu0 %3595
        %vm3603 = vcmask 261120
        %v3604 = vsel %vm3603, %v2771, %v3466
        %v3605 = vsel %vm3603, %v2907, %v3468
        %v3606 = vsel %vm3603, %v3043, %v3470
        %v3607 = vsel %vm3603, %v3179, %v3472
        %v3608 = vsel %vm3603, %v3315, %v3474
        %v3609 = vsel %vm3603, %v3451, %v3476
        %vm3610 = vcmask 523264
        %v3611 = vsel %vm3610, %v3604, %v3490
        %v3612 = vsel %vm3610, %v3605, %v3492
        %v3613 = vsel %vm3610, %v3606, %v3494
        %v3614 = vsel %vm3610, %v3607, %v3496
        %v3615 = vsel %vm3610, %v3608, %v3498
        %v3616 = vsel %vm3610, %v3609, %v3500
        %vm3617 = vcmask 785408
        %v3618 = vsel %vm3617, %v3611, %v3514
        %v3619 = vsel %vm3617, %v3612, %v3516
        %v3620 = vsel %vm3617, %v3613, %v3518
        %v3621 = vsel %vm3617, %v3614, %v3520
        %v3622 = vsel %vm3617, %v3615, %v3522
        %v3623 = vsel %vm3617, %v3616, %v3524
        %v3624 = vsel %vm3603, %v2775, %v3538
        %v3625 = vsel %vm3603, %v2911, %v3540
        %v3626 = vsel %vm3603, %v3047, %v3542
        %v3627 = vsel %vm3603, %v3183, %v3544
        %v3628 = vsel %vm3603, %v3319, %v3546
        %v3629 = vsel %vm3603, %v3455, %v3548
        %v3630 = vsel %vm3610, %v3624, %v3562
        %v3631 = vsel %vm3610, %v3625, %v3564
        %v3632 = vsel %vm3610, %v3626, %v3566
        %v3633 = vsel %vm3610, %v3627, %v3568
        %v3634 = vsel %vm3610, %v3628, %v3570
        %v3635 = vsel %vm3610, %v3629, %v3572
        %v3636 = vsel %vm3617, %v3630, %v3586
        %v3637 = vsel %vm3617, %v3631, %v3588
        %v3638 = vsel %vm3617, %v3632, %v3590
        %v3639 = vsel %vm3617, %v3633, %v3592
        %v3640 = vsel %vm3617, %v3634, %v3594
        %v3641 = vsel %vm3617, %v3635, %v3596
        %v3642 = vld [vmem:[%s1] sm:$0xff]
        %v3643 = vld [vmem:[%s1 + $0x8] sm:$0xff]
        %vm3644 = vcmask 392192
        %v3646 = vsel %vm3644, %v3642, 0
        %v3649 = vsel %vm3644, %v3643, 0
        %3651 = vmatprep.subr.mxu0 %v3636
        %3652 = vmatpush1.msra.mxu0 %v3618
        %3653 = vmatprep.subr.mxu0 %v3637
        %3654 = vmatpush1.msra.mxu0 %v3619
        %3655 = vmatprep.subr.mxu0 %v3638
        %3656 = vmatpush1.msra.mxu0 %v3620
        %3657 = vmatprep.subr.mxu0 %v3639
        %3658 = vmatpush1.msra.mxu0 %v3621
        %3659 = vmatprep.subr.mxu0 %v3640
        %3660 = vmatpush1.msra.mxu0 %v3622
        %3661 = vmatprep.subr.mxu0 %v3641
        %3662 = vmatpush1.msra.mxu0 %v3623
        %3663 = vmatprep.subr.mxu0 0.0
        %3664 = vmatpush1.msra.mxu0 0.0
        %3665 = vmatprep.subr.mxu0 0.0
        %3666 = vmatpush1.msra.mxu0 0.0
        %3667 = vmatprep.subr.mxu0 0.0
        %3668 = vmatpush1.msra.mxu0 0.0
        %3669 = vmatprep.subr.mxu0 0.0
        %3670 = vmatpush1.msra.mxu0 0.0
        %3671 = vmatprep.subr.mxu0 0.0
        %3672 = vmatpush1.msra.mxu0 0.0
        %3673 = vmatprep.subr.mxu0 0.0
        %3674 = vmatpush1.msra.mxu0 0.0
        %3675 = vmatprep.subr.mxu0 0.0
        %3676 = vmatpush1.msra.mxu0 0.0
        %3677 = vmatprep.subr.mxu0 0.0
        %3678 = vmatpush1.msra.mxu0 0.0
        %3679 = vmatprep.subr.mxu0 0.0
        %3680 = vmatpush1.msra.mxu0 0.0
        %3681 = vmatprep.subr.mxu0 0.0
        %3682 = vmatpush1.msra.mxu0 0.0
        %3683 = vmatprep.subr.mxu0 0.0
        %3684 = vmatpush1.msra.mxu0 0.0
        %3685 = vmatprep.subr.mxu0 0.0
        %3686 = vmatpush1.msra.mxu0 0.0
        %3687 = vmatprep.subr.mxu0 0.0
        %3688 = vmatpush1.msra.mxu0 0.0
        %3689 = vmatprep.subr.mxu0 0.0
        %3690 = vmatpush1.msra.mxu0 0.0
        %3691 = vmatprep.subr.mxu0 0.0
        %3692 = vmatpush1.msra.mxu0 0.0
        %3693 = vmatprep.subr.mxu0 0.0
        %3694 = vmatpush1.msra.mxu0 0.0
        %3695 = vmatprep.subr.mxu0 0.0
        %3696 = vmatpush1.msra.mxu0 0.0
        %3697 = vmatprep.subr.mxu0 0.0
        %3698 = vmatpush1.msra.mxu0 0.0
        %3699 = vmatprep.subr.mxu0 0.0
        %3700 = vmatpush1.msra.mxu0 0.0
        %3701 = vmatprep.subr.mxu0 0.0
        %3702 = vmatpush1.msra.mxu0 0.0
        %3703 = vmatprep.subr.mxu0 0.0
        %3704 = vmatpush1.msra.mxu0 0.0
        %3705 = vmatprep.subr.mxu0 0.0
        %3706 = vmatpush1.msra.mxu0 0.0
        %3707 = vmatprep.subr.mxu0 0.0
        %3708 = vmatpush1.msra.mxu0 0.0
        %3709 = vmatprep.subr.mxu0 0.0
        %3710 = vmatpush1.msra.mxu0 0.0
        %3711 = vmatprep.subr.mxu0 0.0
        %3712 = vmatpush1.msra.mxu0 0.0
        %3713 = vmatprep.subr.mxu0 0.0
        %3714 = vmatpush1.msra.mxu0 0.0
        %3715 = vmatprep.mubr.f32.mxu0 0.0
        %3716 = vmatmul.mubr.f32.gmra.mrb[0].mxu0 %v3646
        %v3717 = vpop.f32.mrb[0].mxu0
        %v3718 = vadd.f32 0.0, %v3717
        %v3719 = vpop.f32.mrb[0].mxu0
        %v3720 = vadd.f32 0.0, %v3719
        %3721 = vmatprep.mubr.f32.mxu0 0.0
        %3722 = vmatmul.mubr.f32.gmra.mrb[0].mxu0 %v3649
        %v3723 = vpop.f32.mrb[0].mxu0
        %v3724 = vadd.f32 0.0, %v3723
        %v3725 = vpop.f32.mrb[0].mxu0
        %v3726 = vadd.f32 0.0, %v3725
        %3727 = vdwg.mxu0
        %v3728 = vmax.f32 %v3718, 0.0
        %v3729 = vmax.f32 %v3720, 0.0
        %v3730 = vmax.f32 %v3724, 0.0
        %v3731 = vmax.f32 %v3726, 0.0
        %3732 = vst [vmem:[%s164] sm:$0xff] %v3728
        %3733 = vst [vmem:[%s164 + $0x8] sm:$0xff] %v3729
        %3734 = vst [vmem:[%s164 + $0x10] sm:$0xff] %v3730
        %3735 = vst [vmem:[%s164 + $0x18] sm:$0xff] %v3731
        %s3736 = sand.u32 %s93, 1
        %s3737 = scalar_lea.sflag [#allocation3], %s3736
        %s3738 = sand.u32 %s93, 1
        %s3739 = smul.addr %s3738, 32
        %s3740 = scalar_lea.vmem [#allocation2], %s3739
        // Predicated region
        $region33: #{tpu_custom_call.1} parent=31 // pred_check
          %p3741 = pneg %p103
        $region34: #{tpu_custom_call.1} parent=31 // pred_check_branch
          %3743 = sbr.rel (%p3741) target = $region36
        $region35: #{tpu_custom_call.1} parent=31 // pred_region
          %s3744 = smul.u32 2, %s17
          %s3746 = ssub.s32 512, 512
          %3747 = vsyncadd %s3737, %s3746
          %s3748 = smul.addr %s3744, 128
          %s3749 = scalar_lea.hbm %s3, %s3748
          %s3750 = sshll.u32 %s3740, 4
          %s3751 = int_to_ptr.vmem [resolvable:$true] %s3750
          %3756 = dma.vmem_to_hbm [thread:$0]  %s3751, 512, %s3749, %s3737, 256, 512, 16
        $region36: #{tpu_custom_call.1} parent=31 // pred_fallthru
          _
      $region32: #{tpu_custom_call.1} parent=5 // pred_fallthru
        _
      %p3757 = scmp.le.s32.totalorder 2, %s12
      // Predicated region
      $region37: #{tpu_custom_call.1} parent=5 // pred_check
        %p3758 = pneg %p3757
      $region38: #{tpu_custom_call.1} parent=5 // pred_check_branch
        %3760 = sbr.rel (%p3758) target = $region40
      $region39: #{tpu_custom_call.1} parent=5 // pred_region
        %s3761 = ssub.s32 %s12, 2
        // Predicated region
        $region41: #{tpu_custom_call.1} parent=39 // pred_check
          %p3762 = pneg %p109
        $region42: #{tpu_custom_call.1} parent=39 // pred_check_branch
          %3764 = sbr.rel (%p3762) target = $region44
        $region43: #{tpu_custom_call.1} parent=39 // pred_region
          %s3765 = sand.u32 %s94, 1
          %s3766 = scalar_lea.sflag [#allocation3], %s3765
          %s3767 = sand.u32 %s94, 1
          %s3768 = smul.addr %s3767, 32
          %s3769 = scalar_lea.vmem [#allocation2], %s3768
          %3770 = dma.done %s3766, 512
        $region44: #{tpu_custom_call.1} parent=39 // pred_fallthru
          _
      $region40: #{tpu_custom_call.1} parent=5 // pred_fallthru
        _
    $region6: #{tpu_custom_call.1} parent=1 // loop_footer
      %s16 = sadd.s32 1, %s12
    $region7: #{tpu_custom_call.1} parent=1 // loop_footer_branch
      %11 = sbr.rel target = $region3
    $region8: #{tpu_custom_call.1} parent=1 // loop_exit
      _
    %3771 = vsyncpa [#allocation3], 1
    %s3772 = scalar_lea.sflag [#allocation3], 1
    %3773 = vsyncpa %s3772, 1

</llo_original>
